<compile_context>
chip_gen: v7x
topology: tpu7x:2x2x1
jax: 0.10.0
libtpu: 0.0.40
codegen_flags: <defaults>
</compile_context>

<pallas_src>
import functools

import jax
import jax.numpy as jnp
from jax import lax
from jax.experimental import pallas as pl
from jax.experimental.pallas import tpu as pltpu


# ------------------------------ fused kernel -------------------------------

def _simsiam_fused_kernel(cols_ref, waug_ref, ppool_ref, w1r_ref, pvec_ref,
                          w2_ref, rep_ref, proj_ref):
    """Conv(+bias,ReLU) -> AdaptiveAvgPool2d((2,2)) -> projector MLP, fused.

    cols_ref : (Kpad, B*H*W)   im2col of the padded input, lane-dense columns
                               ordered (b, quadrant, in-window pixel); row 36 is
                               all-ones (conv bias), rows 37.. are zero padding.
    waug_ref : (Cout, Kpad)    conv weight with the bias folded in as a column.
    ppool_ref: (nq, B, B*H*W)  per-quadrant average-pool selectors (1/64 entries).
    w1r_ref  : (nq, Cout, hid) projector w1 rows regrouped by quadrant.
    pvec_ref : (4, >=hid)      packed small vectors [b1; gamma; beta; b2].
    w2_ref   : (hid, P)
    rep_ref  : (nq, B, Cout)   raw pooled features (wrapper -> [B, Cout*nq]).
    proj_ref : (B, P)
    """
    nq = ppool_ref.shape[0]
    batch = ppool_ref.shape[1]
    hidden = w1r_ref.shape[2]
    proj_dim = w2_ref.shape[1]

    # Conv2d(Cin, Cout, 3, padding=1) + bias + ReLU as one channel-major,
    # lane-dense matmul: (Cout, Kpad) @ (Kpad, B*H*W) -> (8, 512).
    conv = jnp.dot(waug_ref[...], cols_ref[...],
                   preferred_element_type=jnp.float32)
    conv = jnp.maximum(conv, 0.0)

    # AdaptiveAvgPool2d((2, 2)) fused with the projector's first Linear:
    # quadrant s -> tiny selector matmul (pooling) + accumulating matmul
    # against the matching rows of w1 (regrouped in the wrapper).
    h = jnp.zeros((batch, hidden), jnp.float32)
    for s in range(nq):
        # pooled_s[b, c] = mean over the 8x8 window of quadrant s.
        pooled_s = lax.dot_general(ppool_ref[s], conv,
                                   (((1,), (1,)), ((), ())),
                                   preferred_element_type=jnp.float32)
        rep_ref[s] = pooled_s.astype(rep_ref.dtype)
        h = h + jnp.dot(pooled_s, w1r_ref[s],
                        preferred_element_type=jnp.float32)

    # Linear bias + BatchNorm1d (training mode: batch stats, biased variance,
    # eps=1e-5) + affine + ReLU.
    h = h + pvec_ref[0:1, 0:hidden]
    mu = jnp.mean(h, axis=0, keepdims=True)
    var = jnp.mean((h - mu) ** 2, axis=0, keepdims=True)
    hn = (h - mu) * lax.rsqrt(var + 1e-5)
    hn = hn * pvec_ref[1:2, 0:hidden] + pvec_ref[2:3, 0:hidden]
    hr = jnp.maximum(hn, 0.0)

    # Final Linear(hidden, projection_size).
    proj = jnp.dot(hr, w2_ref[...], preferred_element_type=jnp.float32)
    proj_ref[...] = (proj + pvec_ref[3:4, 0:proj_dim]).astype(proj_ref.dtype)


# ------------------------------ forward pass -------------------------------

def net_wrapper_forward(x, params, return_projection=True):
    """Equivalent of NetWrapper.forward(x) with the hook on children[-2]."""
    B, Cin, H, W = x.shape
    Cout = params["w_conv"].shape[0]
    hidden = params["w1"].shape[1]
    proj_dim = params["w2"].shape[1]
    oh = ow = 2                         # AdaptiveAvgPool2d((2, 2))
    kh, kw = H // oh, W // ow           # 8x8 pooling windows
    nq = oh * ow
    npix = B * H * W

    f32 = jnp.float32
    x = x.astype(f32)

    # ---- im2col, lane-dense: rows = contraction dim (Cin*9 + bias + pad),
    # ---- column index = b*H*W + (oh*2+ow)*kh*kw + ih*kw + jw.
    xp = jnp.pad(x, ((0, 0), (0, 0), (1, 1), (1, 1)))
    taps = jnp.stack([xp[:, :, dh:dh + H, dw:dw + W]
                      for dh in range(3) for dw in range(3)], axis=2)
    t7 = taps.reshape(B, Cin, 9, oh, kh, ow, kw)
    cols = t7.transpose(1, 2, 0, 3, 5, 4, 6).reshape(Cin * 9, npix)
    kc = Cin * 9 + 1
    kpad = ((kc + 7) // 8) * 8
    cols_aug = jnp.concatenate(
        [cols, jnp.ones((1, npix), f32), jnp.zeros((kpad - kc, npix), f32)],
        axis=0)                                                 # (40, 512)

    # Conv weight with the bias folded in as an extra column.
    w_aug = jnp.concatenate(
        [params["w_conv"].reshape(Cout, Cin * 9).astype(f32),
         params["b_conv"].astype(f32)[:, None],
         jnp.zeros((Cout, kpad - kc), f32)], axis=1)            # (8, 40)

    # Per-quadrant average-pool selectors: ppool[s, b, col] = 1/(kh*kw)
    # iff column `col` belongs to batch b and quadrant s.
    col = jnp.arange(npix)
    b_of = col // (H * W)
    s_of = (col % (H * W)) // (kh * kw)
    ppool = (((b_of[None, None, :] == jnp.arange(B)[None, :, None]) &
              (s_of[None, None, :] == jnp.arange(nq)[:, None, None]))
             .astype(f32) / float(kh * kw))                     # (4, 2, 512)

    # Projector w1 rows regrouped by quadrant: w1_r[s, c, :] = w1[c*nq + s, :]
    w1_r = params["w1"].astype(f32).reshape(Cout, nq, hidden).transpose(1, 0, 2)

    # Packed small vectors: [b1; gamma; beta; b2], zero-padded to one width.
    vec_w = max(hidden, proj_dim)

    def _row(v):
        return jnp.pad(v.astype(f32), (0, vec_w - v.shape[0]))

    pvec = jnp.stack([_row(params["b1"]), _row(params["gamma"]),
                      _row(params["beta"]), _row(params["b2"])], axis=0)

    vmem = pltpu.MemorySpace.VMEM
    rep_raw, proj = pl.pallas_call(
        _simsiam_fused_kernel,
        out_shape=(jax.ShapeDtypeStruct((nq, B, Cout), f32),
                   jax.ShapeDtypeStruct((B, proj_dim), f32)),
        in_specs=[pl.BlockSpec(memory_space=vmem)] * 6,
        out_specs=(pl.BlockSpec(memory_space=vmem),
                   pl.BlockSpec(memory_space=vmem)),
    )(cols_aug, w_aug, ppool, w1_r, pvec, params["w2"].astype(f32))

    # rep_raw[s, b, c] -> representation[b, c*nq + s]  (PyTorch flatten order).
    representation = rep_raw.transpose(1, 2, 0).reshape(B, Cout * nq)
    if not return_projection:
        return representation
    return proj, representation


# ------------------------- pure-JAX reference check -------------------------

def _reference_forward(x, params):
    """XLA reference of the same forward, for a numerical sanity check."""
    y = lax.conv_general_dilated(
        x, params["w_conv"], window_strides=(1, 1), padding=((1, 1), (1, 1)),
        dimension_numbers=("NCHW", "OIHW", "NCHW"),
        precision=lax.Precision.HIGHEST)
    y = jnp.maximum(y + params["b_conv"][None, :, None, None], 0.0)
    B, C, H, W = y.shape
    pooled = y.reshape(B, C, 2, H // 2, 2, W // 2).mean(axis=(3, 5))
    rep = pooled.reshape(B, -1)
    h = jnp.dot(rep, params["w1"], precision=lax.Precision.HIGHEST) + params["b1"]
    mu = h.mean(axis=0, keepdims=True)
    var = ((h - mu) ** 2).mean(axis=0, keepdims=True)
    hn = (h - mu) / jnp.sqrt(var + 1e-5) * params["gamma"] + params["beta"]
    hr = jnp.maximum(hn, 0.0)
    proj = jnp.dot(hr, params["w2"], precision=lax.Precision.HIGHEST) + params["b2"]
    return proj, rep


# ---------------------------------- driver ----------------------------------

def _init_params(key, cin=4, cout=8, rep_dim=32, hidden=64, proj=16):
    ks = jax.random.split(key, 6)
    scale = 0.1
    return {
        # backbone Conv2d(cin, cout, 3, padding=1)
        "w_conv": scale * jax.random.normal(ks[0], (cout, cin, 3, 3), jnp.float32),
        "b_conv": scale * jax.random.normal(ks[1], (cout,), jnp.float32),
        # projector MLP: Linear(rep_dim, hidden) stored as [in, out]
        "w1": scale * jax.random.normal(ks[2], (rep_dim, hidden), jnp.float32),
        "b1": scale * jax.random.normal(ks[3], (hidden,), jnp.float32),
        # BatchNorm1d(hidden) affine params (PyTorch default init)
        "gamma": jnp.ones((hidden,), jnp.float32),
        "beta": jnp.zeros((hidden,), jnp.float32),
        # Linear(hidden, projection_size)
        "w2": scale * jax.random.normal(ks[4], (hidden, proj), jnp.float32),
        "b2": scale * jax.random.normal(ks[5], (proj,), jnp.float32),
    }


if __name__ == "__main__":
    key = jax.random.PRNGKey(0)
    kx, kp = jax.random.split(key)

    B, C, H, W = 2, 4, 16, 16            # NCHW input, like PyTorch
    x = jax.random.normal(kx, (B, C, H, W), jnp.float32)
    params = _init_params(kp)

    fwd = jax.jit(functools.partial(net_wrapper_forward, params=params))
    projection, representation = fwd(x)
    jax.block_until_ready((projection, representation))

    assert projection.shape == (B, 16)
    assert representation.shape == (B, 32)

    # Numerical check against the pure-JAX reference.
    proj_ref, rep_ref = jax.jit(
        functools.partial(_reference_forward, params=params))(x)
    rep_err = float(jnp.max(jnp.abs(representation - rep_ref)))
    proj_err = float(jnp.max(jnp.abs(projection - proj_ref)))
    assert rep_err < 5e-3, f"representation mismatch (max abs err {rep_err})"
    assert proj_err < 1e-1, f"projection mismatch (max abs err {proj_err})"

    print("KERNEL_OK")
</pallas_src>

<mosaic_0001>
module attributes {stable_mosaic.version = 11 : i64} {
  func.func @_simsiam_fused_kernel(%arg0: memref<40x512xf32, #tpu.memory_space<vmem>>, %arg1: memref<8x40xf32, #tpu.memory_space<vmem>>, %arg2: memref<4x2x512xf32, #tpu.memory_space<vmem>>, %arg3: memref<4x8x64xf32, #tpu.memory_space<vmem>>, %arg4: memref<4x64xf32, #tpu.memory_space<vmem>>, %arg5: memref<64x16xf32, #tpu.memory_space<vmem>>, %arg6: memref<4x2x8xf32, #tpu.memory_space<vmem>>, %arg7: memref<2x16xf32, #tpu.memory_space<vmem>>) attributes {dimension_semantics = [], scalar_prefetch = 0 : i64, scratch_operands = 0 : i64, tpu.core_type = #tpu.core_type<tc>} {
    %c0 = arith.constant 0 : index
    %c0_0 = arith.constant 0 : index
    %0 = vector.load %arg1[%c0, %c0_0] : memref<8x40xf32, #tpu.memory_space<vmem>>, vector<8x40xf32>
    %c0_1 = arith.constant 0 : index
    %c0_2 = arith.constant 0 : index
    %1 = vector.load %arg0[%c0_1, %c0_2] : memref<40x512xf32, #tpu.memory_space<vmem>>, vector<40x512xf32>
    %cst = arith.constant dense<0.000000e+00> : vector<8x512xf32>
    %2 = tpu.matmul %0, %1, %cst {dimension_numbers = #tpu.dot_dimension_numbers<[1], [0], [0], [1], [0, 0, 1, 1], [], []>} : vector<8x40xf32>, vector<40x512xf32>, vector<8x512xf32> -> vector<8x512xf32>
    %cst_3 = arith.constant 0.000000e+00 : f32
    %3 = vector.broadcast %cst_3 : f32 to vector<8x512xf32>
    %4 = arith.maximumf %2, %3 : vector<8x512xf32>
    %cst_4 = arith.constant 0.000000e+00 : f32
    %5 = vector.broadcast %cst_4 : f32 to vector<2x64xf32>
    %c0_5 = arith.constant 0 : index
    %c0_6 = arith.constant 0 : index
    %c0_7 = arith.constant 0 : index
    %6 = vector.load %arg2[%c0_5, %c0_6, %c0_7] : memref<4x2x512xf32, #tpu.memory_space<vmem>>, vector<1x2x512xf32>
    %7 = vector.shape_cast %6 : vector<1x2x512xf32> to vector<2x512xf32>
    %cst_8 = arith.constant dense<0.000000e+00> : vector<2x8xf32>
    %8 = tpu.matmul %7, %4, %cst_8 {dimension_numbers = #tpu.dot_dimension_numbers<[1], [1], [0], [0], [0, 0, 1, 0], [], []>} : vector<2x512xf32>, vector<8x512xf32>, vector<2x8xf32> -> vector<2x8xf32>
    %c0_9 = arith.constant 0 : index
    %c0_10 = arith.constant 0 : index
    %c0_11 = arith.constant 0 : index
    %9 = vector.load %arg6[%c0_9, %c0_10, %c0_11] : memref<4x2x8xf32, #tpu.memory_space<vmem>>, vector<1x2x8xf32>
    %10 = vector.shape_cast %9 : vector<1x2x8xf32> to vector<2x8xf32>
    %11 = vector.shape_cast %8 : vector<2x8xf32> to vector<1x2x8xf32>
    tpu.vector_store %arg6[%c0_9, %c0_10, %c0_11], %11 {strides = array<i32>} : memref<4x2x8xf32, #tpu.memory_space<vmem>>, vector<1x2x8xf32>,
    %c0_12 = arith.constant 0 : index
    %c0_13 = arith.constant 0 : index
    %c0_14 = arith.constant 0 : index
    %12 = vector.load %arg3[%c0_12, %c0_13, %c0_14] : memref<4x8x64xf32, #tpu.memory_space<vmem>>, vector<1x8x64xf32>
    %13 = vector.shape_cast %12 : vector<1x8x64xf32> to vector<8x64xf32>
    %cst_15 = arith.constant dense<0.000000e+00> : vector<2x64xf32>
    %14 = tpu.matmul %8, %13, %cst_15 {dimension_numbers = #tpu.dot_dimension_numbers<[1], [0], [0], [1], [0, 0, 1, 1], [], []>} : vector<2x8xf32>, vector<8x64xf32>, vector<2x64xf32> -> vector<2x64xf32>
    %15 = arith.addf %5, %14 : vector<2x64xf32>
    %c1 = arith.constant 1 : index
    %c0_16 = arith.constant 0 : index
    %c0_17 = arith.constant 0 : index
    %16 = vector.load %arg2[%c1, %c0_16, %c0_17] : memref<4x2x512xf32, #tpu.memory_space<vmem>>, vector<1x2x512xf32>
    %17 = vector.shape_cast %16 : vector<1x2x512xf32> to vector<2x512xf32>
    %cst_18 = arith.constant dense<0.000000e+00> : vector<2x8xf32>
    %18 = tpu.matmul %17, %4, %cst_18 {dimension_numbers = #tpu.dot_dimension_numbers<[1], [1], [0], [0], [0, 0, 1, 0], [], []>} : vector<2x512xf32>, vector<8x512xf32>, vector<2x8xf32> -> vector<2x8xf32>
    %c1_19 = arith.constant 1 : index
    %c0_20 = arith.constant 0 : index
    %c0_21 = arith.constant 0 : index
    %19 = vector.load %arg6[%c1_19, %c0_20, %c0_21] : memref<4x2x8xf32, #tpu.memory_space<vmem>>, vector<1x2x8xf32>
    %20 = vector.shape_cast %19 : vector<1x2x8xf32> to vector<2x8xf32>
    %21 = vector.shape_cast %18 : vector<2x8xf32> to vector<1x2x8xf32>
    tpu.vector_store %arg6[%c1_19, %c0_20, %c0_21], %21 {strides = array<i32>} : memref<4x2x8xf32, #tpu.memory_space<vmem>>, vector<1x2x8xf32>,
    %c1_22 = arith.constant 1 : index
    %c0_23 = arith.constant 0 : index
    %c0_24 = arith.constant 0 : index
    %22 = vector.load %arg3[%c1_22, %c0_23, %c0_24] : memref<4x8x64xf32, #tpu.memory_space<vmem>>, vector<1x8x64xf32>
    %23 = vector.shape_cast %22 : vector<1x8x64xf32> to vector<8x64xf32>
    %cst_25 = arith.constant dense<0.000000e+00> : vector<2x64xf32>
    %24 = tpu.matmul %18, %23, %cst_25 {dimension_numbers = #tpu.dot_dimension_numbers<[1], [0], [0], [1], [0, 0, 1, 1], [], []>} : vector<2x8xf32>, vector<8x64xf32>, vector<2x64xf32> -> vector<2x64xf32>
    %25 = arith.addf %15, %24 : vector<2x64xf32>
    %c2 = arith.constant 2 : index
    %c0_26 = arith.constant 0 : index
    %c0_27 = arith.constant 0 : index
    %26 = vector.load %arg2[%c2, %c0_26, %c0_27] : memref<4x2x512xf32, #tpu.memory_space<vmem>>, vector<1x2x512xf32>
    %27 = vector.shape_cast %26 : vector<1x2x512xf32> to vector<2x512xf32>
    %cst_28 = arith.constant dense<0.000000e+00> : vector<2x8xf32>
    %28 = tpu.matmul %27, %4, %cst_28 {dimension_numbers = #tpu.dot_dimension_numbers<[1], [1], [0], [0], [0, 0, 1, 0], [], []>} : vector<2x512xf32>, vector<8x512xf32>, vector<2x8xf32> -> vector<2x8xf32>
    %c2_29 = arith.constant 2 : index
    %c0_30 = arith.constant 0 : index
    %c0_31 = arith.constant 0 : index
    %29 = vector.load %arg6[%c2_29, %c0_30, %c0_31] : memref<4x2x8xf32, #tpu.memory_space<vmem>>, vector<1x2x8xf32>
    %30 = vector.shape_cast %29 : vector<1x2x8xf32> to vector<2x8xf32>
    %31 = vector.shape_cast %28 : vector<2x8xf32> to vector<1x2x8xf32>
    tpu.vector_store %arg6[%c2_29, %c0_30, %c0_31], %31 {strides = array<i32>} : memref<4x2x8xf32, #tpu.memory_space<vmem>>, vector<1x2x8xf32>,
    %c2_32 = arith.constant 2 : index
    %c0_33 = arith.constant 0 : index
    %c0_34 = arith.constant 0 : index
    %32 = vector.load %arg3[%c2_32, %c0_33, %c0_34] : memref<4x8x64xf32, #tpu.memory_space<vmem>>, vector<1x8x64xf32>
    %33 = vector.shape_cast %32 : vector<1x8x64xf32> to vector<8x64xf32>
    %cst_35 = arith.constant dense<0.000000e+00> : vector<2x64xf32>
    %34 = tpu.matmul %28, %33, %cst_35 {dimension_numbers = #tpu.dot_dimension_numbers<[1], [0], [0], [1], [0, 0, 1, 1], [], []>} : vector<2x8xf32>, vector<8x64xf32>, vector<2x64xf32> -> vector<2x64xf32>
    %35 = arith.addf %25, %34 : vector<2x64xf32>
    %c3 = arith.constant 3 : index
    %c0_36 = arith.constant 0 : index
    %c0_37 = arith.constant 0 : index
    %36 = vector.load %arg2[%c3, %c0_36, %c0_37] : memref<4x2x512xf32, #tpu.memory_space<vmem>>, vector<1x2x512xf32>
    %37 = vector.shape_cast %36 : vector<1x2x512xf32> to vector<2x512xf32>
    %cst_38 = arith.constant dense<0.000000e+00> : vector<2x8xf32>
    %38 = tpu.matmul %37, %4, %cst_38 {dimension_numbers = #tpu.dot_dimension_numbers<[1], [1], [0], [0], [0, 0, 1, 0], [], []>} : vector<2x512xf32>, vector<8x512xf32>, vector<2x8xf32> -> vector<2x8xf32>
    %c3_39 = arith.constant 3 : index
    %c0_40 = arith.constant 0 : index
    %c0_41 = arith.constant 0 : index
    %39 = vector.load %arg6[%c3_39, %c0_40, %c0_41] : memref<4x2x8xf32, #tpu.memory_space<vmem>>, vector<1x2x8xf32>
    %40 = vector.shape_cast %39 : vector<1x2x8xf32> to vector<2x8xf32>
    %41 = vector.shape_cast %38 : vector<2x8xf32> to vector<1x2x8xf32>
    tpu.vector_store %arg6[%c3_39, %c0_40, %c0_41], %41 {strides = array<i32>} : memref<4x2x8xf32, #tpu.memory_space<vmem>>, vector<1x2x8xf32>,
    %c3_42 = arith.constant 3 : index
    %c0_43 = arith.constant 0 : index
    %c0_44 = arith.constant 0 : index
    %42 = vector.load %arg3[%c3_42, %c0_43, %c0_44] : memref<4x8x64xf32, #tpu.memory_space<vmem>>, vector<1x8x64xf32>
    %43 = vector.shape_cast %42 : vector<1x8x64xf32> to vector<8x64xf32>
    %cst_45 = arith.constant dense<0.000000e+00> : vector<2x64xf32>
    %44 = tpu.matmul %38, %43, %cst_45 {dimension_numbers = #tpu.dot_dimension_numbers<[1], [0], [0], [1], [0, 0, 1, 1], [], []>} : vector<2x8xf32>, vector<8x64xf32>, vector<2x64xf32> -> vector<2x64xf32>
    %45 = arith.addf %35, %44 : vector<2x64xf32>
    %c0_46 = arith.constant 0 : index
    %c0_47 = arith.constant 0 : index
    %46 = vector.load %arg4[%c0_46, %c0_47] : memref<4x64xf32, #tpu.memory_space<vmem>>, vector<1x64xf32>
    %47 = vector.broadcast %46 : vector<1x64xf32> to vector<2x64xf32>
    %48 = arith.addf %45, %47 : vector<2x64xf32>
    %cst_48 = arith.constant dense<0.000000e+00> : vector<64xf32>
    %49 = vector.multi_reduction <add>, %48, %cst_48 [0] : vector<2x64xf32> to vector<64xf32>
    %50 = vector.shape_cast %49 : vector<64xf32> to vector<1x64xf32>
    %cst_49 = arith.constant 2.000000e+00 : f32
    %51 = vector.broadcast %cst_49 : f32 to vector<1x64xf32>
    %52 = arith.divf %50, %51 : vector<1x64xf32>
    %53 = vector.broadcast %52 : vector<1x64xf32> to vector<2x64xf32>
    %54 = arith.subf %48, %53 : vector<2x64xf32>
    %55 = arith.mulf %54, %54 : vector<2x64xf32>
    %cst_50 = arith.constant dense<0.000000e+00> : vector<64xf32>
    %56 = vector.multi_reduction <add>, %55, %cst_50 [0] : vector<2x64xf32> to vector<64xf32>
    %57 = vector.shape_cast %56 : vector<64xf32> to vector<1x64xf32>
    %cst_51 = arith.constant 2.000000e+00 : f32
    %58 = vector.broadcast %cst_51 : f32 to vector<1x64xf32>
    %59 = arith.divf %57, %58 : vector<1x64xf32>
    %60 = vector.broadcast %52 : vector<1x64xf32> to vector<2x64xf32>
    %61 = arith.subf %48, %60 : vector<2x64xf32>
    %cst_52 = arith.constant 9.99999974E-6 : f32
    %62 = vector.broadcast %cst_52 : f32 to vector<1x64xf32>
    %63 = arith.addf %59, %62 : vector<1x64xf32>
    %64 = math.rsqrt %63 : vector<1x64xf32>
    %65 = vector.broadcast %64 : vector<1x64xf32> to vector<2x64xf32>
    %66 = arith.mulf %61, %65 : vector<2x64xf32>
    %c1_53 = arith.constant 1 : index
    %c0_54 = arith.constant 0 : index
    %67 = vector.load %arg4[%c1_53, %c0_54] : memref<4x64xf32, #tpu.memory_space<vmem>>, vector<1x64xf32>
    %68 = vector.broadcast %67 : vector<1x64xf32> to vector<2x64xf32>
    %69 = arith.mulf %66, %68 : vector<2x64xf32>
    %c2_55 = arith.constant 2 : index
    %c0_56 = arith.constant 0 : index
    %70 = vector.load %arg4[%c2_55, %c0_56] : memref<4x64xf32, #tpu.memory_space<vmem>>, vector<1x64xf32>
    %71 = vector.broadcast %70 : vector<1x64xf32> to vector<2x64xf32>
    %72 = arith.addf %69, %71 : vector<2x64xf32>
    %cst_57 = arith.constant 0.000000e+00 : f32
    %73 = vector.broadcast %cst_57 : f32 to vector<2x64xf32>
    %74 = arith.maximumf %72, %73 : vector<2x64xf32>
    %c0_58 = arith.constant 0 : index
    %c0_59 = arith.constant 0 : index
    %75 = vector.load %arg5[%c0_58, %c0_59] : memref<64x16xf32, #tpu.memory_space<vmem>>, vector<64x16xf32>
    %cst_60 = arith.constant dense<0.000000e+00> : vector<2x16xf32>
    %76 = tpu.matmul %74, %75, %cst_60 {dimension_numbers = #tpu.dot_dimension_numbers<[1], [0], [0], [1], [0, 0, 1, 1], [], []>} : vector<2x64xf32>, vector<64x16xf32>, vector<2x16xf32> -> vector<2x16xf32>
    %c3_61 = arith.constant 3 : index
    %c0_62 = arith.constant 0 : index
    %77 = vector.load %arg4[%c3_61, %c0_62] : memref<4x64xf32, #tpu.memory_space<vmem>>, vector<1x16xf32>
    %78 = vector.broadcast %77 : vector<1x16xf32> to vector<2x16xf32>
    %79 = arith.addf %76, %78 : vector<2x16xf32>
    %c0_63 = arith.constant 0 : index
    %c0_64 = arith.constant 0 : index
    %80 = vector.load %arg7[%c0_63, %c0_64] : memref<2x16xf32, #tpu.memory_space<vmem>>, vector<2x16xf32>
    tpu.vector_store %arg7[%c0_63, %c0_64], %79 {strides = array<i32>} : memref<2x16xf32, #tpu.memory_space<vmem>>, vector<2x16xf32>,
    return
  }
}

</mosaic_0001>

<llo_original>
// kernel: net_wrapper_forward.1
$region0: #{net_wrapper_forward.1}
  #allocation0 [shape = 'u32[]', space=smem, size = 0x4, offset = 0x4, fixed_abs, tag = 'smem constant byte address 0x4 - core index']
  #allocation1 [shape = 'u32[144,128]{1,0:T(1,128)}', space=vmem, size = 0x12000, scoped, tag = 'internal scratch']
  %s0 = inlined_call_operand.vmem [shape: f32[40,512], index: 0, kind: input, shape index: {}]
  %s1 = inlined_call_operand.vmem [shape: f32[8,40], index: 1, kind: input, shape index: {}]
  %s2 = inlined_call_operand.vmem [shape: f32[4,2,512], index: 2, kind: input, shape index: {}]
  %s3 = inlined_call_operand.vmem [shape: f32[4,8,64], index: 3, kind: input, shape index: {}]
  %s4 = inlined_call_operand.vmem [shape: f32[4,64], index: 4, kind: input, shape index: {}]
  %s5 = inlined_call_operand.vmem [shape: f32[64,16], index: 5, kind: input, shape index: {}]
  %s6 = inlined_call_operand.vmem [shape: f32[4,2,8], index: 6, kind: output, shape index: {0}]
  %s7 = inlined_call_operand.hbm [shape: f32[2,16], index: 7, kind: output, shape index: {1}]
  %8 = xla_tuple %s6, %s7
  %s9 = sld [smem:[#allocation0]]
  $region42: #{net_wrapper_forward.1} parent=0
    _
  %s11 = ssub.s32 1, %s9
  %s12 = scalar_select 0, %s11, %s9
  $region1: #{net_wrapper_forward.1} parent=0
    #allocation2 [shape = 'u8[1024]{0}', space=vmem, size = 0x400, scoped, tag = 'output window, operand 1, single buffered']
    #allocation3 [shape = 's32[1]{0}', space=sflag, size = 0x4, scoped, tag = 'scoped memory for net_wrapper_forward.1']
    %13 = vsyncpa [#allocation3], 0
    // Predicated region
    $region2: #{net_wrapper_forward.1} parent=1 // pred_check
      _
    $region3: #{net_wrapper_forward.1} parent=1 // pred_check_branch
      %15 = sbr.rel (0) target = $region5
    $region4: #{net_wrapper_forward.1} parent=1 // pred_region
      _
    $region5: #{net_wrapper_forward.1} parent=1 // pred_fallthru
      _
    // Predicated region
    $region6: #{net_wrapper_forward.1} parent=1 // pred_check
      _
    $region7: #{net_wrapper_forward.1} parent=1 // pred_check_branch
      %17 = sbr.rel (0) target = $region9
    $region8: #{net_wrapper_forward.1} parent=1 // pred_region
      _
    $region9: #{net_wrapper_forward.1} parent=1 // pred_fallthru
      _
    // Predicated region
    $region10: #{net_wrapper_forward.1} parent=1 // pred_check
      _
    $region11: #{net_wrapper_forward.1} parent=1 // pred_check_branch
      %19 = sbr.rel (0) target = $region13
    $region12: #{net_wrapper_forward.1} parent=1 // pred_region
      _
    $region13: #{net_wrapper_forward.1} parent=1 // pred_fallthru
      _
    // Predicated region
    $region14: #{net_wrapper_forward.1} parent=1 // pred_check
      _
    $region15: #{net_wrapper_forward.1} parent=1 // pred_check_branch
      %21 = sbr.rel (0) target = $region17
    $region16: #{net_wrapper_forward.1} parent=1 // pred_region
      _
    $region17: #{net_wrapper_forward.1} parent=1 // pred_fallthru
      _
    // Predicated region
    $region18: #{net_wrapper_forward.1} parent=1 // pred_check
      _
    $region19: #{net_wrapper_forward.1} parent=1 // pred_check_branch
      %23 = sbr.rel (0) target = $region21
    $region20: #{net_wrapper_forward.1} parent=1 // pred_region
      _
    $region21: #{net_wrapper_forward.1} parent=1 // pred_fallthru
      _
    // Predicated region
    $region22: #{net_wrapper_forward.1} parent=1 // pred_check
      _
    $region23: #{net_wrapper_forward.1} parent=1 // pred_check_branch
      %25 = sbr.rel (0) target = $region25
    $region24: #{net_wrapper_forward.1} parent=1 // pred_region
      _
    $region25: #{net_wrapper_forward.1} parent=1 // pred_fallthru
      _
    %v26 = vld [vmem:[%s1] sm:$0xff]
    %v27 = vld [vmem:[%s0] sm:$0xff]
    %v28 = vld [vmem:[%s0 + $0x8] sm:$0xff]
    %v29 = vld [vmem:[%s0 + $0x10] sm:$0xff]
    %v30 = vld [vmem:[%s0 + $0x18] sm:$0xff]
    %v31 = vld [vmem:[%s0 + $0x20] sm:$0xff]
    %v32 = vld [vmem:[%s0 + $0x28] sm:$0xff]
    %v33 = vld [vmem:[%s0 + $0x30] sm:$0xff]
    %v34 = vld [vmem:[%s0 + $0x38] sm:$0xff]
    %v35 = vld [vmem:[%s0 + $0x40] sm:$0xff]
    %v36 = vld [vmem:[%s0 + $0x48] sm:$0xff]
    %v37 = vld [vmem:[%s0 + $0x50] sm:$0xff]
    %v38 = vld [vmem:[%s0 + $0x58] sm:$0xff]
    %v39 = vld [vmem:[%s0 + $0x60] sm:$0xff]
    %v40 = vld [vmem:[%s0 + $0x68] sm:$0xff]
    %v41 = vld [vmem:[%s0 + $0x70] sm:$0xff]
    %v42 = vld [vmem:[%s0 + $0x78] sm:$0xff]
    %v43 = vld [vmem:[%s0 + $0x80] sm:$0xff]
    %v44 = vld [vmem:[%s0 + $0x88] sm:$0xff]
    %v45 = vld [vmem:[%s0 + $0x90] sm:$0xff]
    %v46 = vld [vmem:[%s0 + $0x98] sm:$0xff]
    %vm47 = vcmask 326656
    %v49 = vsel %vm47, %v26, 0
    %51 = vmatprep.subr.mxu0 %v28
    %52 = vmatpush1.msra.mxu0 %v27
    %53 = vmatprep.subr.mxu0 %v32
    %54 = vmatpush1.msra.mxu0 %v31
    %55 = vmatprep.subr.mxu0 %v36
    %56 = vmatpush1.msra.mxu0 %v35
    %57 = vmatprep.subr.mxu0 %v40
    %58 = vmatpush1.msra.mxu0 %v39
    %59 = vmatprep.subr.mxu0 %v44
    %60 = vmatpush1.msra.mxu0 %v43
    %61 = vmatprep.subr.mxu0 0.0
    %62 = vmatpush1.msra.mxu0 0.0
    %63 = vmatprep.subr.mxu0 0.0
    %64 = vmatpush1.msra.mxu0 0.0
    %65 = vmatprep.subr.mxu0 0.0
    %66 = vmatpush1.msra.mxu0 0.0
    %67 = vmatprep.subr.mxu0 0.0
    %68 = vmatpush1.msra.mxu0 0.0
    %69 = vmatprep.subr.mxu0 0.0
    %70 = vmatpush1.msra.mxu0 0.0
    %71 = vmatprep.subr.mxu0 0.0
    %72 = vmatpush1.msra.mxu0 0.0
    %73 = vmatprep.subr.mxu0 0.0
    %74 = vmatpush1.msra.mxu0 0.0
    %75 = vmatprep.subr.mxu0 0.0
    %76 = vmatpush1.msra.mxu0 0.0
    %77 = vmatprep.subr.mxu0 0.0
    %78 = vmatpush1.msra.mxu0 0.0
    %79 = vmatprep.subr.mxu0 0.0
    %80 = vmatpush1.msra.mxu0 0.0
    %81 = vmatprep.subr.mxu0 0.0
    %82 = vmatpush1.msra.mxu0 0.0
    %83 = vmatprep.subr.mxu0 0.0
    %84 = vmatpush1.msra.mxu0 0.0
    %85 = vmatprep.subr.mxu0 0.0
    %86 = vmatpush1.msra.mxu0 0.0
    %87 = vmatprep.subr.mxu0 0.0
    %88 = vmatpush1.msra.mxu0 0.0
    %89 = vmatprep.subr.mxu0 0.0
    %90 = vmatpush1.msra.mxu0 0.0
    %91 = vmatprep.subr.mxu0 0.0
    %92 = vmatpush1.msra.mxu0 0.0
    %93 = vmatprep.subr.mxu0 0.0
    %94 = vmatpush1.msra.mxu0 0.0
    %95 = vmatprep.subr.mxu0 0.0
    %96 = vmatpush1.msra.mxu0 0.0
    %97 = vmatprep.subr.mxu0 0.0
    %98 = vmatpush1.msra.mxu0 0.0
    %99 = vmatprep.subr.mxu0 0.0
    %100 = vmatpush1.msra.mxu0 0.0
    %101 = vmatprep.subr.mxu0 0.0
    %102 = vmatpush1.msra.mxu0 0.0
    %103 = vmatprep.subr.mxu0 0.0
    %104 = vmatpush1.msra.mxu0 0.0
    %105 = vmatprep.subr.mxu0 0.0
    %106 = vmatpush1.msra.mxu0 0.0
    %107 = vmatprep.subr.mxu0 0.0
    %108 = vmatpush1.msra.mxu0 0.0
    %109 = vmatprep.subr.mxu0 0.0
    %110 = vmatpush1.msra.mxu0 0.0
    %111 = vmatprep.subr.mxu0 0.0
    %112 = vmatpush1.msra.mxu0 0.0
    %113 = vmatprep.subr.mxu0 0.0
    %114 = vmatpush1.msra.mxu0 0.0
    %115 = vmatprep.mubr.f32.mxu0 0.0
    %116 = vmatmul.mubr.f32.gmra.mrb[0].mxu0 %v49
    %v117 = vpop.f32.mrb[0].mxu0
    %v118 = vadd.f32 0.0, %v117
    %v119 = vpop.f32.mrb[0].mxu0
    %v120 = vadd.f32 0.0, %v119
    %121 = vdwg.mxu0
    %122 = vmatprep.subr.mxu0 %v30
    %123 = vmatpush1.msra.mxu0 %v29
    %124 = vmatprep.subr.mxu0 %v34
    %125 = vmatpush1.msra.mxu0 %v33
    %126 = vmatprep.subr.mxu0 %v38
    %127 = vmatpush1.msra.mxu0 %v37
    %128 = vmatprep.subr.mxu0 %v42
    %129 = vmatpush1.msra.mxu0 %v41
    %130 = vmatprep.subr.mxu0 %v46
    %131 = vmatpush1.msra.mxu0 %v45
    %132 = vmatprep.subr.mxu0 0.0
    %133 = vmatpush1.msra.mxu0 0.0
    %134 = vmatprep.subr.mxu0 0.0
    %135 = vmatpush1.msra.mxu0 0.0
    %136 = vmatprep.subr.mxu0 0.0
    %137 = vmatpush1.msra.mxu0 0.0
    %138 = vmatprep.subr.mxu0 0.0
    %139 = vmatpush1.msra.mxu0 0.0
    %140 = vmatprep.subr.mxu0 0.0
    %141 = vmatpush1.msra.mxu0 0.0
    %142 = vmatprep.subr.mxu0 0.0
    %143 = vmatpush1.msra.mxu0 0.0
    %144 = vmatprep.subr.mxu0 0.0
    %145 = vmatpush1.msra.mxu0 0.0
    %146 = vmatprep.subr.mxu0 0.0
    %147 = vmatpush1.msra.mxu0 0.0
    %148 = vmatprep.subr.mxu0 0.0
    %149 = vmatpush1.msra.mxu0 0.0
    %150 = vmatprep.subr.mxu0 0.0
    %151 = vmatpush1.msra.mxu0 0.0
    %152 = vmatprep.subr.mxu0 0.0
    %153 = vmatpush1.msra.mxu0 0.0
    %154 = vmatprep.subr.mxu0 0.0
    %155 = vmatpush1.msra.mxu0 0.0
    %156 = vmatprep.subr.mxu0 0.0
    %157 = vmatpush1.msra.mxu0 0.0
    %158 = vmatprep.subr.mxu0 0.0
    %159 = vmatpush1.msra.mxu0 0.0
    %160 = vmatprep.subr.mxu0 0.0
    %161 = vmatpush1.msra.mxu0 0.0
    %162 = vmatprep.subr.mxu0 0.0
    %163 = vmatpush1.msra.mxu0 0.0
    %164 = vmatprep.subr.mxu0 0.0
    %165 = vmatpush1.msra.mxu0 0.0
    %166 = vmatprep.subr.mxu0 0.0
    %167 = vmatpush1.msra.mxu0 0.0
    %168 = vmatprep.subr.mxu0 0.0
    %169 = vmatpush1.msra.mxu0 0.0
    %170 = vmatprep.subr.mxu0 0.0
    %171 = vmatpush1.msra.mxu0 0.0
    %172 = vmatprep.subr.mxu0 0.0
    %173 = vmatpush1.msra.mxu0 0.0
    %174 = vmatprep.subr.mxu0 0.0
    %175 = vmatpush1.msra.mxu0 0.0
    %176 = vmatprep.subr.mxu0 0.0
    %177 = vmatpush1.msra.mxu0 0.0
    %178 = vmatprep.subr.mxu0 0.0
    %179 = vmatpush1.msra.mxu0 0.0
    %180 = vmatprep.subr.mxu0 0.0
    %181 = vmatpush1.msra.mxu0 0.0
    %182 = vmatprep.subr.mxu0 0.0
    %183 = vmatpush1.msra.mxu0 0.0
    %184 = vmatprep.subr.mxu0 0.0
    %185 = vmatpush1.msra.mxu0 0.0
    %186 = vmatprep.mubr.f32.mxu0 0.0
    %187 = vmatmul.mubr.f32.gmra.mrb[0].mxu0 %v49
    %v188 = vpop.f32.mrb[0].mxu0
    %v189 = vadd.f32 0.0, %v188
    %v190 = vpop.f32.mrb[0].mxu0
    %v191 = vadd.f32 0.0, %v190
    %192 = vdwg.mxu0
    %v193 = vmax.f32 %v118, 0.0
    %v194 = vmax.f32 %v120, 0.0
    %v195 = vmax.f32 %v189, 0.0
    %v196 = vmax.f32 %v191, 0.0
    %v197 = vld [vmem:[%s2] sm:$0xff]
    %v199 = vcombine.high %v197, %v197
    %v201 = vunpack.c.l.s4 1983009808
    %v202 = vunpack.c.0.s8 %v201
    %v203 = vlaneseq
    %v204 = vshrl.u32 %v203, 7
    %v205 = vsub.s32 %v202, %v204
    %v206 = vrot.slane %v197, %v205
    %v208 = vunpack.c.l.s4 1983009808
    %v209 = vunpack.c.0.s8 %v208
    %v210 = vlaneseq
    %v211 = vshrl.u32 %v210, 7
    %v212 = vsub.s32 %v209, %v211
    %v213 = vrot.slane %v199, %v212
    %v214 = vcombine.high %v206, %v206
    %v215 = vcombine.high %v213, %v213
    %220 = vmatprep.subr.mxu0 %v194
    %221 = vmatpush1.xpose.msra.mxu0 %v193
    %222 = vmatprep.subr.mxu0 0.0
    %223 = vmatpush1.xpose.msra.mxu0 0.0
    %224 = vmatprep.subr.mxu0 0.0
    %225 = vmatpush1.xpose.msra.mxu0 0.0
    %226 = vmatprep.subr.mxu0 0.0
    %227 = vmatpush1.xpose.msra.mxu0 0.0
    %228 = vmatprep.subr.mxu0 0.0
    %229 = vmatpush1.xpose.msra.mxu0 0.0
    %230 = vmatprep.subr.mxu0 0.0
    %231 = vmatpush1.xpose.msra.mxu0 0.0
    %232 = vmatprep.subr.mxu0 0.0
    %233 = vmatpush1.xpose.msra.mxu0 0.0
    %234 = vmatprep.subr.mxu0 0.0
    %235 = vmatpush1.xpose.msra.mxu0 0.0
    %236 = vmatprep.subr.mxu0 0.0
    %237 = vmatpush1.xpose.msra.mxu0 0.0
    %238 = vmatprep.subr.mxu0 0.0
    %239 = vmatpush1.xpose.msra.mxu0 0.0
    %240 = vmatprep.subr.mxu0 0.0
    %241 = vmatpush1.xpose.msra.mxu0 0.0
    %242 = vmatprep.subr.mxu0 0.0
    %243 = vmatpush1.xpose.msra.mxu0 0.0
    %244 = vmatprep.subr.mxu0 0.0
    %245 = vmatpush1.xpose.msra.mxu0 0.0
    %246 = vmatprep.subr.mxu0 0.0
    %247 = vmatpush1.xpose.msra.mxu0 0.0
    %248 = vmatprep.subr.mxu0 0.0
    %249 = vmatpush1.xpose.msra.mxu0 0.0
    %250 = vmatprep.subr.mxu0 0.0
    %251 = vmatpush1.xpose.msra.mxu0 0.0
    %252 = vmatprep.subr.mxu0 0.0
    %253 = vmatpush1.xpose.msra.mxu0 0.0
    %254 = vmatprep.subr.mxu0 0.0
    %255 = vmatpush1.xpose.msra.mxu0 0.0
    %256 = vmatprep.subr.mxu0 0.0
    %257 = vmatpush1.xpose.msra.mxu0 0.0
    %258 = vmatprep.subr.mxu0 0.0
    %259 = vmatpush1.xpose.msra.mxu0 0.0
    %260 = vmatprep.subr.mxu0 0.0
    %261 = vmatpush1.xpose.msra.mxu0 0.0
    %262 = vmatprep.subr.mxu0 0.0
    %263 = vmatpush1.xpose.msra.mxu0 0.0
    %264 = vmatprep.subr.mxu0 0.0
    %265 = vmatpush1.xpose.msra.mxu0 0.0
    %266 = vmatprep.subr.mxu0 0.0
    %267 = vmatpush1.xpose.msra.mxu0 0.0
    %268 = vmatprep.subr.mxu0 0.0
    %269 = vmatpush1.xpose.msra.mxu0 0.0
    %270 = vmatprep.subr.mxu0 0.0
    %271 = vmatpush1.xpose.msra.mxu0 0.0
    %272 = vmatprep.subr.mxu0 0.0
    %273 = vmatpush1.xpose.msra.mxu0 0.0
    %274 = vmatprep.subr.mxu0 0.0
    %275 = vmatpush1.xpose.msra.mxu0 0.0
    %276 = vmatprep.subr.mxu0 0.0
    %277 = vmatpush1.xpose.msra.mxu0 0.0
    %278 = vmatprep.subr.mxu0 0.0
    %279 = vmatpush1.xpose.msra.mxu0 0.0
    %280 = vmatprep.subr.mxu0 0.0
    %281 = vmatpush1.xpose.msra.mxu0 0.0
    %282 = vmatprep.subr.mxu0 0.0
    %283 = vmatpush1.xpose.msra.mxu0 0.0
    %284 = vmatprep.mubr.f32.mxu0 %v214
    %285 = vmatmul.mubr.f32.gmra.mrb[0].mxu0 %v206
    %v286 = vpop.f32.mrb[0].mxu0
    %v287 = vadd.f32 0.0, %v286
    %v288 = vpop.f32.mrb[0].mxu0
    %289 = vdwg.mxu0
    %290 = vmatprep.subr.mxu0 %v196
    %291 = vmatpush1.xpose.msra.mxu0 %v195
    %292 = vmatprep.subr.mxu0 0.0
    %293 = vmatpush1.xpose.msra.mxu0 0.0
    %294 = vmatprep.subr.mxu0 0.0
    %295 = vmatpush1.xpose.msra.mxu0 0.0
    %296 = vmatprep.subr.mxu0 0.0
    %297 = vmatpush1.xpose.msra.mxu0 0.0
    %298 = vmatprep.subr.mxu0 0.0
    %299 = vmatpush1.xpose.msra.mxu0 0.0
    %300 = vmatprep.subr.mxu0 0.0
    %301 = vmatpush1.xpose.msra.mxu0 0.0
    %302 = vmatprep.subr.mxu0 0.0
    %303 = vmatpush1.xpose.msra.mxu0 0.0
    %304 = vmatprep.subr.mxu0 0.0
    %305 = vmatpush1.xpose.msra.mxu0 0.0
    %306 = vmatprep.subr.mxu0 0.0
    %307 = vmatpush1.xpose.msra.mxu0 0.0
    %308 = vmatprep.subr.mxu0 0.0
    %309 = vmatpush1.xpose.msra.mxu0 0.0
    %310 = vmatprep.subr.mxu0 0.0
    %311 = vmatpush1.xpose.msra.mxu0 0.0
    %312 = vmatprep.subr.mxu0 0.0
    %313 = vmatpush1.xpose.msra.mxu0 0.0
    %314 = vmatprep.subr.mxu0 0.0
    %315 = vmatpush1.xpose.msra.mxu0 0.0
    %316 = vmatprep.subr.mxu0 0.0
    %317 = vmatpush1.xpose.msra.mxu0 0.0
    %318 = vmatprep.subr.mxu0 0.0
    %319 = vmatpush1.xpose.msra.mxu0 0.0
    %320 = vmatprep.subr.mxu0 0.0
    %321 = vmatpush1.xpose.msra.mxu0 0.0
    %322 = vmatprep.subr.mxu0 0.0
    %323 = vmatpush1.xpose.msra.mxu0 0.0
    %324 = vmatprep.subr.mxu0 0.0
    %325 = vmatpush1.xpose.msra.mxu0 0.0
    %326 = vmatprep.subr.mxu0 0.0
    %327 = vmatpush1.xpose.msra.mxu0 0.0
    %328 = vmatprep.subr.mxu0 0.0
    %329 = vmatpush1.xpose.msra.mxu0 0.0
    %330 = vmatprep.subr.mxu0 0.0
    %331 = vmatpush1.xpose.msra.mxu0 0.0
    %332 = vmatprep.subr.mxu0 0.0
    %333 = vmatpush1.xpose.msra.mxu0 0.0
    %334 = vmatprep.subr.mxu0 0.0
    %335 = vmatpush1.xpose.msra.mxu0 0.0
    %336 = vmatprep.subr.mxu0 0.0
    %337 = vmatpush1.xpose.msra.mxu0 0.0
    %338 = vmatprep.subr.mxu0 0.0
    %339 = vmatpush1.xpose.msra.mxu0 0.0
    %340 = vmatprep.subr.mxu0 0.0
    %341 = vmatpush1.xpose.msra.mxu0 0.0
    %342 = vmatprep.subr.mxu0 0.0
    %343 = vmatpush1.xpose.msra.mxu0 0.0
    %344 = vmatprep.subr.mxu0 0.0
    %345 = vmatpush1.xpose.msra.mxu0 0.0
    %346 = vmatprep.subr.mxu0 0.0
    %347 = vmatpush1.xpose.msra.mxu0 0.0
    %348 = vmatprep.subr.mxu0 0.0
    %349 = vmatpush1.xpose.msra.mxu0 0.0
    %350 = vmatprep.subr.mxu0 0.0
    %351 = vmatpush1.xpose.msra.mxu0 0.0
    %352 = vmatprep.subr.mxu0 0.0
    %353 = vmatpush1.xpose.msra.mxu0 0.0
    %354 = vmatprep.mubr.f32.mxu0 %v215
    %355 = vmatmul.mubr.f32.gmra.mrb[0].mxu0 %v213
    %v356 = vpop.f32.mrb[0].mxu0
    %v357 = vadd.f32 %v287, %v356
    %v358 = vpop.f32.mrb[0].mxu0
    %359 = vdwg.mxu0
    %vm360 = vcmask 58368
    %361 = vst.msk [vmem:[%s6] sm:$0x3] %vm360, %v357
    %v362 = vld [vmem:[%s3] sm:$0xff]
    %s363 = scalar_lea.vmem %s2, 8
    %v364 = vld [vmem:[%s363] sm:$0xff]
    %v366 = vcombine.high %v364, %v364
    %v368 = vunpack.c.l.s4 1983009808
    %v369 = vunpack.c.0.s8 %v368
    %v370 = vlaneseq
    %v371 = vshrl.u32 %v370, 7
    %v372 = vsub.s32 %v369, %v371
    %v373 = vrot.slane %v364, %v372
    %v375 = vunpack.c.l.s4 1983009808
    %v376 = vunpack.c.0.s8 %v375
    %v377 = vlaneseq
    %v378 = vshrl.u32 %v377, 7
    %v379 = vsub.s32 %v376, %v378
    %v380 = vrot.slane %v366, %v379
    %v381 = vcombine.high %v373, %v373
    %v382 = vcombine.high %v380, %v380
    %387 = vmatprep.subr.mxu0 %v194
    %388 = vmatpush1.xpose.msra.mxu0 %v193
    %389 = vmatprep.subr.mxu0 0.0
    %390 = vmatpush1.xpose.msra.mxu0 0.0
    %391 = vmatprep.subr.mxu0 0.0
    %392 = vmatpush1.xpose.msra.mxu0 0.0
    %393 = vmatprep.subr.mxu0 0.0
    %394 = vmatpush1.xpose.msra.mxu0 0.0
    %395 = vmatprep.subr.mxu0 0.0
    %396 = vmatpush1.xpose.msra.mxu0 0.0
    %397 = vmatprep.subr.mxu0 0.0
    %398 = vmatpush1.xpose.msra.mxu0 0.0
    %399 = vmatprep.subr.mxu0 0.0
    %400 = vmatpush1.xpose.msra.mxu0 0.0
    %401 = vmatprep.subr.mxu0 0.0
    %402 = vmatpush1.xpose.msra.mxu0 0.0
    %403 = vmatprep.subr.mxu0 0.0
    %404 = vmatpush1.xpose.msra.mxu0 0.0
    %405 = vmatprep.subr.mxu0 0.0
    %406 = vmatpush1.xpose.msra.mxu0 0.0
    %407 = vmatprep.subr.mxu0 0.0
    %408 = vmatpush1.xpose.msra.mxu0 0.0
    %409 = vmatprep.subr.mxu0 0.0
    %410 = vmatpush1.xpose.msra.mxu0 0.0
    %411 = vmatprep.subr.mxu0 0.0
    %412 = vmatpush1.xpose.msra.mxu0 0.0
    %413 = vmatprep.subr.mxu0 0.0
    %414 = vmatpush1.xpose.msra.mxu0 0.0
    %415 = vmatprep.subr.mxu0 0.0
    %416 = vmatpush1.xpose.msra.mxu0 0.0
    %417 = vmatprep.subr.mxu0 0.0
    %418 = vmatpush1.xpose.msra.mxu0 0.0
    %419 = vmatprep.subr.mxu0 0.0
    %420 = vmatpush1.xpose.msra.mxu0 0.0
    %421 = vmatprep.subr.mxu0 0.0
    %422 = vmatpush1.xpose.msra.mxu0 0.0
    %423 = vmatprep.subr.mxu0 0.0
    %424 = vmatpush1.xpose.msra.mxu0 0.0
    %425 = vmatprep.subr.mxu0 0.0
    %426 = vmatpush1.xpose.msra.mxu0 0.0
    %427 = vmatprep.subr.mxu0 0.0
    %428 = vmatpush1.xpose.msra.mxu0 0.0
    %429 = vmatprep.subr.mxu0 0.0
    %430 = vmatpush1.xpose.msra.mxu0 0.0
    %431 = vmatprep.subr.mxu0 0.0
    %432 = vmatpush1.xpose.msra.mxu0 0.0
    %433 = vmatprep.subr.mxu0 0.0
    %434 = vmatpush1.xpose.msra.mxu0 0.0
    %435 = vmatprep.subr.mxu0 0.0
    %436 = vmatpush1.xpose.msra.mxu0 0.0
    %437 = vmatprep.subr.mxu0 0.0
    %438 = vmatpush1.xpose.msra.mxu0 0.0
    %439 = vmatprep.subr.mxu0 0.0
    %440 = vmatpush1.xpose.msra.mxu0 0.0
    %441 = vmatprep.subr.mxu0 0.0
    %442 = vmatpush1.xpose.msra.mxu0 0.0
    %443 = vmatprep.subr.mxu0 0.0
    %444 = vmatpush1.xpose.msra.mxu0 0.0
    %445 = vmatprep.subr.mxu0 0.0
    %446 = vmatpush1.xpose.msra.mxu0 0.0
    %447 = vmatprep.subr.mxu0 0.0
    %448 = vmatpush1.xpose.msra.mxu0 0.0
    %449 = vmatprep.subr.mxu0 0.0
    %450 = vmatpush1.xpose.msra.mxu0 0.0
    %451 = vmatprep.mubr.f32.mxu0 %v381
    %452 = vmatmul.mubr.f32.gmra.mrb[0].mxu0 %v373
    %v453 = vpop.f32.mrb[0].mxu0
    %v454 = vadd.f32 0.0, %v453
    %v455 = vpop.f32.mrb[0].mxu0
    %456 = vdwg.mxu0
    %457 = vmatprep.subr.mxu0 %v196
    %458 = vmatpush1.xpose.msra.mxu0 %v195
    %459 = vmatprep.subr.mxu0 0.0
    %460 = vmatpush1.xpose.msra.mxu0 0.0
    %461 = vmatprep.subr.mxu0 0.0
    %462 = vmatpush1.xpose.msra.mxu0 0.0
    %463 = vmatprep.subr.mxu0 0.0
    %464 = vmatpush1.xpose.msra.mxu0 0.0
    %465 = vmatprep.subr.mxu0 0.0
    %466 = vmatpush1.xpose.msra.mxu0 0.0
    %467 = vmatprep.subr.mxu0 0.0
    %468 = vmatpush1.xpose.msra.mxu0 0.0
    %469 = vmatprep.subr.mxu0 0.0
    %470 = vmatpush1.xpose.msra.mxu0 0.0
    %471 = vmatprep.subr.mxu0 0.0
    %472 = vmatpush1.xpose.msra.mxu0 0.0
    %473 = vmatprep.subr.mxu0 0.0
    %474 = vmatpush1.xpose.msra.mxu0 0.0
    %475 = vmatprep.subr.mxu0 0.0
    %476 = vmatpush1.xpose.msra.mxu0 0.0
    %477 = vmatprep.subr.mxu0 0.0
    %478 = vmatpush1.xpose.msra.mxu0 0.0
    %479 = vmatprep.subr.mxu0 0.0
    %480 = vmatpush1.xpose.msra.mxu0 0.0
    %481 = vmatprep.subr.mxu0 0.0
    %482 = vmatpush1.xpose.msra.mxu0 0.0
    %483 = vmatprep.subr.mxu0 0.0
    %484 = vmatpush1.xpose.msra.mxu0 0.0
    %485 = vmatprep.subr.mxu0 0.0
    %486 = vmatpush1.xpose.msra.mxu0 0.0
    %487 = vmatprep.subr.mxu0 0.0
    %488 = vmatpush1.xpose.msra.mxu0 0.0
    %489 = vmatprep.subr.mxu0 0.0
    %490 = vmatpush1.xpose.msra.mxu0 0.0
    %491 = vmatprep.subr.mxu0 0.0
    %492 = vmatpush1.xpose.msra.mxu0 0.0
    %493 = vmatprep.subr.mxu0 0.0
    %494 = vmatpush1.xpose.msra.mxu0 0.0
    %495 = vmatprep.subr.mxu0 0.0
    %496 = vmatpush1.xpose.msra.mxu0 0.0
    %497 = vmatprep.subr.mxu0 0.0
    %498 = vmatpush1.xpose.msra.mxu0 0.0
    %499 = vmatprep.subr.mxu0 0.0
    %500 = vmatpush1.xpose.msra.mxu0 0.0
    %501 = vmatprep.subr.mxu0 0.0
    %502 = vmatpush1.xpose.msra.mxu0 0.0
    %503 = vmatprep.subr.mxu0 0.0
    %504 = vmatpush1.xpose.msra.mxu0 0.0
    %505 = vmatprep.subr.mxu0 0.0
    %506 = vmatpush1.xpose.msra.mxu0 0.0
    %507 = vmatprep.subr.mxu0 0.0
    %508 = vmatpush1.xpose.msra.mxu0 0.0
    %509 = vmatprep.subr.mxu0 0.0
    %510 = vmatpush1.xpose.msra.mxu0 0.0
    %511 = vmatprep.subr.mxu0 0.0
    %512 = vmatpush1.xpose.msra.mxu0 0.0
    %513 = vmatprep.subr.mxu0 0.0
    %514 = vmatpush1.xpose.msra.mxu0 0.0
    %515 = vmatprep.subr.mxu0 0.0
    %516 = vmatpush1.xpose.msra.mxu0 0.0
    %517 = vmatprep.subr.mxu0 0.0
    %518 = vmatpush1.xpose.msra.mxu0 0.0
    %519 = vmatprep.subr.mxu0 0.0
    %520 = vmatpush1.xpose.msra.mxu0 0.0
    %521 = vmatprep.mubr.f32.mxu0 %v382
    %522 = vmatmul.mubr.f32.gmra.mrb[0].mxu0 %v380
    %v523 = vpop.f32.mrb[0].mxu0
    %v524 = vadd.f32 %v454, %v523
    %v525 = vpop.f32.mrb[0].mxu0
    %526 = vdwg.mxu0
    %s527 = scalar_lea.vmem %s6, 2
    %528 = vst.msk [vmem:[%s527] sm:$0x3] %vm360, %v524
    %s529 = scalar_lea.vmem %s3, 8
    %v530 = vld [vmem:[%s529] sm:$0xff]
    %vm531 = vcmask 64512
    %v533 = vsel %vm531, %v524, 0
    %535 = vmatprep.subr.mxu0 0.0
    %536 = vmatpush1.msra.mxu0 %v530
    %537 = vmatprep.subr.mxu0 0.0
    %538 = vmatpush1.msra.mxu0 0.0
    %539 = vmatprep.subr.mxu0 0.0
    %540 = vmatpush1.msra.mxu0 0.0
    %541 = vmatprep.subr.mxu0 0.0
    %542 = vmatpush1.msra.mxu0 0.0
    %543 = vmatprep.subr.mxu0 0.0
    %544 = vmatpush1.msra.mxu0 0.0
    %545 = vmatprep.subr.mxu0 0.0
    %546 = vmatpush1.msra.mxu0 0.0
    %547 = vmatprep.subr.mxu0 0.0
    %548 = vmatpush1.msra.mxu0 0.0
    %549 = vmatprep.subr.mxu0 0.0
    %550 = vmatpush1.msra.mxu0 0.0
    %551 = vmatprep.subr.mxu0 0.0
    %552 = vmatpush1.msra.mxu0 0.0
    %553 = vmatprep.subr.mxu0 0.0
    %554 = vmatpush1.msra.mxu0 0.0
    %555 = vmatprep.subr.mxu0 0.0
    %556 = vmatpush1.msra.mxu0 0.0
    %557 = vmatprep.subr.mxu0 0.0
    %558 = vmatpush1.msra.mxu0 0.0
    %559 = vmatprep.subr.mxu0 0.0
    %560 = vmatpush1.msra.mxu0 0.0
    %561 = vmatprep.subr.mxu0 0.0
    %562 = vmatpush1.msra.mxu0 0.0
    %563 = vmatprep.subr.mxu0 0.0
    %564 = vmatpush1.msra.mxu0 0.0
    %565 = vmatprep.subr.mxu0 0.0
    %566 = vmatpush1.msra.mxu0 0.0
    %567 = vmatprep.subr.mxu0 0.0
    %568 = vmatpush1.msra.mxu0 0.0
    %569 = vmatprep.subr.mxu0 0.0
    %570 = vmatpush1.msra.mxu0 0.0
    %571 = vmatprep.subr.mxu0 0.0
    %572 = vmatpush1.msra.mxu0 0.0
    %573 = vmatprep.subr.mxu0 0.0
    %574 = vmatpush1.msra.mxu0 0.0
    %575 = vmatprep.subr.mxu0 0.0
    %576 = vmatpush1.msra.mxu0 0.0
    %577 = vmatprep.subr.mxu0 0.0
    %578 = vmatpush1.msra.mxu0 0.0
    %579 = vmatprep.subr.mxu0 0.0
    %580 = vmatpush1.msra.mxu0 0.0
    %581 = vmatprep.subr.mxu0 0.0
    %582 = vmatpush1.msra.mxu0 0.0
    %583 = vmatprep.subr.mxu0 0.0
    %584 = vmatpush1.msra.mxu0 0.0
    %585 = vmatprep.subr.mxu0 0.0
    %586 = vmatpush1.msra.mxu0 0.0
    %587 = vmatprep.subr.mxu0 0.0
    %588 = vmatpush1.msra.mxu0 0.0
    %589 = vmatprep.subr.mxu0 0.0
    %590 = vmatpush1.msra.mxu0 0.0
    %591 = vmatprep.subr.mxu0 0.0
    %592 = vmatpush1.msra.mxu0 0.0
    %593 = vmatprep.subr.mxu0 0.0
    %594 = vmatpush1.msra.mxu0 0.0
    %595 = vmatprep.subr.mxu0 0.0
    %596 = vmatpush1.msra.mxu0 0.0
    %597 = vmatprep.subr.mxu0 0.0
    %598 = vmatpush1.msra.mxu0 0.0
    %599 = vmatprep.mubr.f32.mxu0 0.0
    %600 = vmatmul.mubr.f32.gmra.mrb[0].mxu0 %v533
    %v601 = vpop.f32.mrb[0].mxu0
    %v602 = vadd.f32 0.0, %v601
    %v603 = vpop.f32.mrb[0].mxu0
    %604 = vdwg.mxu0
    %v606 = vsel %vm531, %v357, 0
    %608 = vmatprep.subr.mxu0 0.0
    %609 = vmatpush1.msra.mxu0 %v362
    %610 = vmatprep.subr.mxu0 0.0
    %611 = vmatpush1.msra.mxu0 0.0
    %612 = vmatprep.subr.mxu0 0.0
    %613 = vmatpush1.msra.mxu0 0.0
    %614 = vmatprep.subr.mxu0 0.0
    %615 = vmatpush1.msra.mxu0 0.0
    %616 = vmatprep.subr.mxu0 0.0
    %617 = vmatpush1.msra.mxu0 0.0
    %618 = vmatprep.subr.mxu0 0.0
    %619 = vmatpush1.msra.mxu0 0.0
    %620 = vmatprep.subr.mxu0 0.0
    %621 = vmatpush1.msra.mxu0 0.0
    %622 = vmatprep.subr.mxu0 0.0
    %623 = vmatpush1.msra.mxu0 0.0
    %624 = vmatprep.subr.mxu0 0.0
    %625 = vmatpush1.msra.mxu0 0.0
    %626 = vmatprep.subr.mxu0 0.0
    %627 = vmatpush1.msra.mxu0 0.0
    %628 = vmatprep.subr.mxu0 0.0
    %629 = vmatpush1.msra.mxu0 0.0
    %630 = vmatprep.subr.mxu0 0.0
    %631 = vmatpush1.msra.mxu0 0.0
    %632 = vmatprep.subr.mxu0 0.0
    %633 = vmatpush1.msra.mxu0 0.0
    %634 = vmatprep.subr.mxu0 0.0
    %635 = vmatpush1.msra.mxu0 0.0
    %636 = vmatprep.subr.mxu0 0.0
    %637 = vmatpush1.msra.mxu0 0.0
    %638 = vmatprep.subr.mxu0 0.0
    %639 = vmatpush1.msra.mxu0 0.0
    %640 = vmatprep.subr.mxu0 0.0
    %641 = vmatpush1.msra.mxu0 0.0
    %642 = vmatprep.subr.mxu0 0.0
    %643 = vmatpush1.msra.mxu0 0.0
    %644 = vmatprep.subr.mxu0 0.0
    %645 = vmatpush1.msra.mxu0 0.0
    %646 = vmatprep.subr.mxu0 0.0
    %647 = vmatpush1.msra.mxu0 0.0
    %648 = vmatprep.subr.mxu0 0.0
    %649 = vmatpush1.msra.mxu0 0.0
    %650 = vmatprep.subr.mxu0 0.0
    %651 = vmatpush1.msra.mxu0 0.0
    %652 = vmatprep.subr.mxu0 0.0
    %653 = vmatpush1.msra.mxu0 0.0
    %654 = vmatprep.subr.mxu0 0.0
    %655 = vmatpush1.msra.mxu0 0.0
    %656 = vmatprep.subr.mxu0 0.0
    %657 = vmatpush1.msra.mxu0 0.0
    %658 = vmatprep.subr.mxu0 0.0
    %659 = vmatpush1.msra.mxu0 0.0
    %660 = vmatprep.subr.mxu0 0.0
    %661 = vmatpush1.msra.mxu0 0.0
    %662 = vmatprep.subr.mxu0 0.0
    %663 = vmatpush1.msra.mxu0 0.0
    %664 = vmatprep.subr.mxu0 0.0
    %665 = vmatpush1.msra.mxu0 0.0
    %666 = vmatprep.subr.mxu0 0.0
    %667 = vmatpush1.msra.mxu0 0.0
    %668 = vmatprep.subr.mxu0 0.0
    %669 = vmatpush1.msra.mxu0 0.0
    %670 = vmatprep.subr.mxu0 0.0
    %671 = vmatpush1.msra.mxu0 0.0
    %672 = vmatprep.mubr.f32.mxu0 0.0
    %673 = vmatmul.mubr.f32.gmra.mrb[0].mxu0 %v606
    %v674 = vpop.f32.mrb[0].mxu0
    %v675 = vadd.f32 %v602, %v674
    %v676 = vpop.f32.mrb[0].mxu0
    %677 = vdwg.mxu0
    %s678 = scalar_lea.vmem %s2, 16
    %v679 = vld [vmem:[%s678] sm:$0xff]
    %v681 = vcombine.high %v679, %v679
    %v683 = vunpack.c.l.s4 1983009808
    %v684 = vunpack.c.0.s8 %v683
    %v685 = vlaneseq
    %v686 = vshrl.u32 %v685, 7
    %v687 = vsub.s32 %v684, %v686
    %v688 = vrot.slane %v679, %v687
    %v690 = vunpack.c.l.s4 1983009808
    %v691 = vunpack.c.0.s8 %v690
    %v692 = vlaneseq
    %v693 = vshrl.u32 %v692, 7
    %v694 = vsub.s32 %v691, %v693
    %v695 = vrot.slane %v681, %v694
    %v696 = vcombine.high %v688, %v688
    %v697 = vcombine.high %v695, %v695
    %702 = vmatprep.subr.mxu0 %v194
    %703 = vmatpush1.xpose.msra.mxu0 %v193
    %704 = vmatprep.subr.mxu0 0.0
    %705 = vmatpush1.xpose.msra.mxu0 0.0
    %706 = vmatprep.subr.mxu0 0.0
    %707 = vmatpush1.xpose.msra.mxu0 0.0
    %708 = vmatprep.subr.mxu0 0.0
    %709 = vmatpush1.xpose.msra.mxu0 0.0
    %710 = vmatprep.subr.mxu0 0.0
    %711 = vmatpush1.xpose.msra.mxu0 0.0
    %712 = vmatprep.subr.mxu0 0.0
    %713 = vmatpush1.xpose.msra.mxu0 0.0
    %714 = vmatprep.subr.mxu0 0.0
    %715 = vmatpush1.xpose.msra.mxu0 0.0
    %716 = vmatprep.subr.mxu0 0.0
    %717 = vmatpush1.xpose.msra.mxu0 0.0
    %718 = vmatprep.subr.mxu0 0.0
    %719 = vmatpush1.xpose.msra.mxu0 0.0
    %720 = vmatprep.subr.mxu0 0.0
    %721 = vmatpush1.xpose.msra.mxu0 0.0
    %722 = vmatprep.subr.mxu0 0.0
    %723 = vmatpush1.xpose.msra.mxu0 0.0
    %724 = vmatprep.subr.mxu0 0.0
    %725 = vmatpush1.xpose.msra.mxu0 0.0
    %726 = vmatprep.subr.mxu0 0.0
    %727 = vmatpush1.xpose.msra.mxu0 0.0
    %728 = vmatprep.subr.mxu0 0.0
    %729 = vmatpush1.xpose.msra.mxu0 0.0
    %730 = vmatprep.subr.mxu0 0.0
    %731 = vmatpush1.xpose.msra.mxu0 0.0
    %732 = vmatprep.subr.mxu0 0.0
    %733 = vmatpush1.xpose.msra.mxu0 0.0
    %734 = vmatprep.subr.mxu0 0.0
    %735 = vmatpush1.xpose.msra.mxu0 0.0
    %736 = vmatprep.subr.mxu0 0.0
    %737 = vmatpush1.xpose.msra.mxu0 0.0
    %738 = vmatprep.subr.mxu0 0.0
    %739 = vmatpush1.xpose.msra.mxu0 0.0
    %740 = vmatprep.subr.mxu0 0.0
    %741 = vmatpush1.xpose.msra.mxu0 0.0
    %742 = vmatprep.subr.mxu0 0.0
    %743 = vmatpush1.xpose.msra.mxu0 0.0
    %744 = vmatprep.subr.mxu0 0.0
    %745 = vmatpush1.xpose.msra.mxu0 0.0
    %746 = vmatprep.subr.mxu0 0.0
    %747 = vmatpush1.xpose.msra.mxu0 0.0
    %748 = vmatprep.subr.mxu0 0.0
    %749 = vmatpush1.xpose.msra.mxu0 0.0
    %750 = vmatprep.subr.mxu0 0.0
    %751 = vmatpush1.xpose.msra.mxu0 0.0
    %752 = vmatprep.subr.mxu0 0.0
    %753 = vmatpush1.xpose.msra.mxu0 0.0
    %754 = vmatprep.subr.mxu0 0.0
    %755 = vmatpush1.xpose.msra.mxu0 0.0
    %756 = vmatprep.subr.mxu0 0.0
    %757 = vmatpush1.xpose.msra.mxu0 0.0
    %758 = vmatprep.subr.mxu0 0.0
    %759 = vmatpush1.xpose.msra.mxu0 0.0
    %760 = vmatprep.subr.mxu0 0.0
    %761 = vmatpush1.xpose.msra.mxu0 0.0
    %762 = vmatprep.subr.mxu0 0.0
    %763 = vmatpush1.xpose.msra.mxu0 0.0
    %764 = vmatprep.subr.mxu0 0.0
    %765 = vmatpush1.xpose.msra.mxu0 0.0
    %766 = vmatprep.mubr.f32.mxu0 %v696
    %767 = vmatmul.mubr.f32.gmra.mrb[0].mxu0 %v688
    %v768 = vpop.f32.mrb[0].mxu0
    %v769 = vadd.f32 0.0, %v768
    %v770 = vpop.f32.mrb[0].mxu0
    %771 = vdwg.mxu0
    %772 = vmatprep.subr.mxu0 %v196
    %773 = vmatpush1.xpose.msra.mxu0 %v195
    %774 = vmatprep.subr.mxu0 0.0
    %775 = vmatpush1.xpose.msra.mxu0 0.0
    %776 = vmatprep.subr.mxu0 0.0
    %777 = vmatpush1.xpose.msra.mxu0 0.0
    %778 = vmatprep.subr.mxu0 0.0
    %779 = vmatpush1.xpose.msra.mxu0 0.0
    %780 = vmatprep.subr.mxu0 0.0
    %781 = vmatpush1.xpose.msra.mxu0 0.0
    %782 = vmatprep.subr.mxu0 0.0
    %783 = vmatpush1.xpose.msra.mxu0 0.0
    %784 = vmatprep.subr.mxu0 0.0
    %785 = vmatpush1.xpose.msra.mxu0 0.0
    %786 = vmatprep.subr.mxu0 0.0
    %787 = vmatpush1.xpose.msra.mxu0 0.0
    %788 = vmatprep.subr.mxu0 0.0
    %789 = vmatpush1.xpose.msra.mxu0 0.0
    %790 = vmatprep.subr.mxu0 0.0
    %791 = vmatpush1.xpose.msra.mxu0 0.0
    %792 = vmatprep.subr.mxu0 0.0
    %793 = vmatpush1.xpose.msra.mxu0 0.0
    %794 = vmatprep.subr.mxu0 0.0
    %795 = vmatpush1.xpose.msra.mxu0 0.0
    %796 = vmatprep.subr.mxu0 0.0
    %797 = vmatpush1.xpose.msra.mxu0 0.0
    %798 = vmatprep.subr.mxu0 0.0
    %799 = vmatpush1.xpose.msra.mxu0 0.0
    %800 = vmatprep.subr.mxu0 0.0
    %801 = vmatpush1.xpose.msra.mxu0 0.0
    %802 = vmatprep.subr.mxu0 0.0
    %803 = vmatpush1.xpose.msra.mxu0 0.0
    %804 = vmatprep.subr.mxu0 0.0
    %805 = vmatpush1.xpose.msra.mxu0 0.0
    %806 = vmatprep.subr.mxu0 0.0
    %807 = vmatpush1.xpose.msra.mxu0 0.0
    %808 = vmatprep.subr.mxu0 0.0
    %809 = vmatpush1.xpose.msra.mxu0 0.0
    %810 = vmatprep.subr.mxu0 0.0
    %811 = vmatpush1.xpose.msra.mxu0 0.0
    %812 = vmatprep.subr.mxu0 0.0
    %813 = vmatpush1.xpose.msra.mxu0 0.0
    %814 = vmatprep.subr.mxu0 0.0
    %815 = vmatpush1.xpose.msra.mxu0 0.0
    %816 = vmatprep.subr.mxu0 0.0
    %817 = vmatpush1.xpose.msra.mxu0 0.0
    %818 = vmatprep.subr.mxu0 0.0
    %819 = vmatpush1.xpose.msra.mxu0 0.0
    %820 = vmatprep.subr.mxu0 0.0
    %821 = vmatpush1.xpose.msra.mxu0 0.0
    %822 = vmatprep.subr.mxu0 0.0
    %823 = vmatpush1.xpose.msra.mxu0 0.0
    %824 = vmatprep.subr.mxu0 0.0
    %825 = vmatpush1.xpose.msra.mxu0 0.0
    %826 = vmatprep.subr.mxu0 0.0
    %827 = vmatpush1.xpose.msra.mxu0 0.0
    %828 = vmatprep.subr.mxu0 0.0
    %829 = vmatpush1.xpose.msra.mxu0 0.0
    %830 = vmatprep.subr.mxu0 0.0
    %831 = vmatpush1.xpose.msra.mxu0 0.0
    %832 = vmatprep.subr.mxu0 0.0
    %833 = vmatpush1.xpose.msra.mxu0 0.0
    %834 = vmatprep.subr.mxu0 0.0
    %835 = vmatpush1.xpose.msra.mxu0 0.0
    %836 = vmatprep.mubr.f32.mxu0 %v697
    %837 = vmatmul.mubr.f32.gmra.mrb[0].mxu0 %v695
    %v838 = vpop.f32.mrb[0].mxu0
    %v839 = vadd.f32 %v769, %v838
    %v840 = vpop.f32.mrb[0].mxu0
    %841 = vdwg.mxu0
    %s842 = scalar_lea.vmem %s6, 4
    %843 = vst.msk [vmem:[%s842] sm:$0x3] %vm360, %v839
    %s844 = scalar_lea.vmem %s3, 16
    %v845 = vld [vmem:[%s844] sm:$0xff]
    %v847 = vsel %vm531, %v839, 0
    %849 = vmatprep.subr.mxu0 0.0
    %850 = vmatpush1.msra.mxu0 %v845
    %851 = vmatprep.subr.mxu0 0.0
    %852 = vmatpush1.msra.mxu0 0.0
    %853 = vmatprep.subr.mxu0 0.0
    %854 = vmatpush1.msra.mxu0 0.0
    %855 = vmatprep.subr.mxu0 0.0
    %856 = vmatpush1.msra.mxu0 0.0
    %857 = vmatprep.subr.mxu0 0.0
    %858 = vmatpush1.msra.mxu0 0.0
    %859 = vmatprep.subr.mxu0 0.0
    %860 = vmatpush1.msra.mxu0 0.0
    %861 = vmatprep.subr.mxu0 0.0
    %862 = vmatpush1.msra.mxu0 0.0
    %863 = vmatprep.subr.mxu0 0.0
    %864 = vmatpush1.msra.mxu0 0.0
    %865 = vmatprep.subr.mxu0 0.0
    %866 = vmatpush1.msra.mxu0 0.0
    %867 = vmatprep.subr.mxu0 0.0
    %868 = vmatpush1.msra.mxu0 0.0
    %869 = vmatprep.subr.mxu0 0.0
    %870 = vmatpush1.msra.mxu0 0.0
    %871 = vmatprep.subr.mxu0 0.0
    %872 = vmatpush1.msra.mxu0 0.0
    %873 = vmatprep.subr.mxu0 0.0
    %874 = vmatpush1.msra.mxu0 0.0
    %875 = vmatprep.subr.mxu0 0.0
    %876 = vmatpush1.msra.mxu0 0.0
    %877 = vmatprep.subr.mxu0 0.0
    %878 = vmatpush1.msra.mxu0 0.0
    %879 = vmatprep.subr.mxu0 0.0
    %880 = vmatpush1.msra.mxu0 0.0
    %881 = vmatprep.subr.mxu0 0.0
    %882 = vmatpush1.msra.mxu0 0.0
    %883 = vmatprep.subr.mxu0 0.0
    %884 = vmatpush1.msra.mxu0 0.0
    %885 = vmatprep.subr.mxu0 0.0
    %886 = vmatpush1.msra.mxu0 0.0
    %887 = vmatprep.subr.mxu0 0.0
    %888 = vmatpush1.msra.mxu0 0.0
    %889 = vmatprep.subr.mxu0 0.0
    %890 = vmatpush1.msra.mxu0 0.0
    %891 = vmatprep.subr.mxu0 0.0
    %892 = vmatpush1.msra.mxu0 0.0
    %893 = vmatprep.subr.mxu0 0.0
    %894 = vmatpush1.msra.mxu0 0.0
    %895 = vmatprep.subr.mxu0 0.0
    %896 = vmatpush1.msra.mxu0 0.0
    %897 = vmatprep.subr.mxu0 0.0
    %898 = vmatpush1.msra.mxu0 0.0
    %899 = vmatprep.subr.mxu0 0.0
    %900 = vmatpush1.msra.mxu0 0.0
    %901 = vmatprep.subr.mxu0 0.0
    %902 = vmatpush1.msra.mxu0 0.0
    %903 = vmatprep.subr.mxu0 0.0
    %904 = vmatpush1.msra.mxu0 0.0
    %905 = vmatprep.subr.mxu0 0.0
    %906 = vmatpush1.msra.mxu0 0.0
    %907 = vmatprep.subr.mxu0 0.0
    %908 = vmatpush1.msra.mxu0 0.0
    %909 = vmatprep.subr.mxu0 0.0
    %910 = vmatpush1.msra.mxu0 0.0
    %911 = vmatprep.subr.mxu0 0.0
    %912 = vmatpush1.msra.mxu0 0.0
    %913 = vmatprep.mubr.f32.mxu0 0.0
    %914 = vmatmul.mubr.f32.gmra.mrb[0].mxu0 %v847
    %v915 = vpop.f32.mrb[0].mxu0
    %v916 = vadd.f32 0.0, %v915
    %v917 = vpop.f32.mrb[0].mxu0
    %918 = vdwg.mxu0
    %v919 = vadd.f32 %v675, %v916
    %s920 = scalar_lea.vmem %s2, 24
    %v921 = vld [vmem:[%s920] sm:$0xff]
    %v923 = vcombine.high %v921, %v921
    %v925 = vunpack.c.l.s4 1983009808
    %v926 = vunpack.c.0.s8 %v925
    %v927 = vlaneseq
    %v928 = vshrl.u32 %v927, 7
    %v929 = vsub.s32 %v926, %v928
    %v930 = vrot.slane %v921, %v929
    %v932 = vunpack.c.l.s4 1983009808
    %v933 = vunpack.c.0.s8 %v932
    %v934 = vlaneseq
    %v935 = vshrl.u32 %v934, 7
    %v936 = vsub.s32 %v933, %v935
    %v937 = vrot.slane %v923, %v936
    %v938 = vcombine.high %v930, %v930
    %v939 = vcombine.high %v937, %v937
    %944 = vmatprep.subr.mxu0 %v194
    %945 = vmatpush1.xpose.msra.mxu0 %v193
    %946 = vmatprep.subr.mxu0 0.0
    %947 = vmatpush1.xpose.msra.mxu0 0.0
    %948 = vmatprep.subr.mxu0 0.0
    %949 = vmatpush1.xpose.msra.mxu0 0.0
    %950 = vmatprep.subr.mxu0 0.0
    %951 = vmatpush1.xpose.msra.mxu0 0.0
    %952 = vmatprep.subr.mxu0 0.0
    %953 = vmatpush1.xpose.msra.mxu0 0.0
    %954 = vmatprep.subr.mxu0 0.0
    %955 = vmatpush1.xpose.msra.mxu0 0.0
    %956 = vmatprep.subr.mxu0 0.0
    %957 = vmatpush1.xpose.msra.mxu0 0.0
    %958 = vmatprep.subr.mxu0 0.0
    %959 = vmatpush1.xpose.msra.mxu0 0.0
    %960 = vmatprep.subr.mxu0 0.0
    %961 = vmatpush1.xpose.msra.mxu0 0.0
    %962 = vmatprep.subr.mxu0 0.0
    %963 = vmatpush1.xpose.msra.mxu0 0.0
    %964 = vmatprep.subr.mxu0 0.0
    %965 = vmatpush1.xpose.msra.mxu0 0.0
    %966 = vmatprep.subr.mxu0 0.0
    %967 = vmatpush1.xpose.msra.mxu0 0.0
    %968 = vmatprep.subr.mxu0 0.0
    %969 = vmatpush1.xpose.msra.mxu0 0.0
    %970 = vmatprep.subr.mxu0 0.0
    %971 = vmatpush1.xpose.msra.mxu0 0.0
    %972 = vmatprep.subr.mxu0 0.0
    %973 = vmatpush1.xpose.msra.mxu0 0.0
    %974 = vmatprep.subr.mxu0 0.0
    %975 = vmatpush1.xpose.msra.mxu0 0.0
    %976 = vmatprep.subr.mxu0 0.0
    %977 = vmatpush1.xpose.msra.mxu0 0.0
    %978 = vmatprep.subr.mxu0 0.0
    %979 = vmatpush1.xpose.msra.mxu0 0.0
    %980 = vmatprep.subr.mxu0 0.0
    %981 = vmatpush1.xpose.msra.mxu0 0.0
    %982 = vmatprep.subr.mxu0 0.0
    %983 = vmatpush1.xpose.msra.mxu0 0.0
    %984 = vmatprep.subr.mxu0 0.0
    %985 = vmatpush1.xpose.msra.mxu0 0.0
    %986 = vmatprep.subr.mxu0 0.0
    %987 = vmatpush1.xpose.msra.mxu0 0.0
    %988 = vmatprep.subr.mxu0 0.0
    %989 = vmatpush1.xpose.msra.mxu0 0.0
    %990 = vmatprep.subr.mxu0 0.0
    %991 = vmatpush1.xpose.msra.mxu0 0.0
    %992 = vmatprep.subr.mxu0 0.0
    %993 = vmatpush1.xpose.msra.mxu0 0.0
    %994 = vmatprep.subr.mxu0 0.0
    %995 = vmatpush1.xpose.msra.mxu0 0.0
    %996 = vmatprep.subr.mxu0 0.0
    %997 = vmatpush1.xpose.msra.mxu0 0.0
    %998 = vmatprep.subr.mxu0 0.0
    %999 = vmatpush1.xpose.msra.mxu0 0.0
    %1000 = vmatprep.subr.mxu0 0.0
    %1001 = vmatpush1.xpose.msra.mxu0 0.0
    %1002 = vmatprep.subr.mxu0 0.0
    %1003 = vmatpush1.xpose.msra.mxu0 0.0
    %1004 = vmatprep.subr.mxu0 0.0
    %1005 = vmatpush1.xpose.msra.mxu0 0.0
    %1006 = vmatprep.subr.mxu0 0.0
    %1007 = vmatpush1.xpose.msra.mxu0 0.0
    %1008 = vmatprep.mubr.f32.mxu0 %v938
    %1009 = vmatmul.mubr.f32.gmra.mrb[0].mxu0 %v930
    %v1010 = vpop.f32.mrb[0].mxu0
    %v1011 = vadd.f32 0.0, %v1010
    %v1012 = vpop.f32.mrb[0].mxu0
    %1013 = vdwg.mxu0
    %1014 = vmatprep.subr.mxu0 %v196
    %1015 = vmatpush1.xpose.msra.mxu0 %v195
    %1016 = vmatprep.subr.mxu0 0.0
    %1017 = vmatpush1.xpose.msra.mxu0 0.0
    %1018 = vmatprep.subr.mxu0 0.0
    %1019 = vmatpush1.xpose.msra.mxu0 0.0
    %1020 = vmatprep.subr.mxu0 0.0
    %1021 = vmatpush1.xpose.msra.mxu0 0.0
    %1022 = vmatprep.subr.mxu0 0.0
    %1023 = vmatpush1.xpose.msra.mxu0 0.0
    %1024 = vmatprep.subr.mxu0 0.0
    %1025 = vmatpush1.xpose.msra.mxu0 0.0
    %1026 = vmatprep.subr.mxu0 0.0
    %1027 = vmatpush1.xpose.msra.mxu0 0.0
    %1028 = vmatprep.subr.mxu0 0.0
    %1029 = vmatpush1.xpose.msra.mxu0 0.0
    %1030 = vmatprep.subr.mxu0 0.0
    %1031 = vmatpush1.xpose.msra.mxu0 0.0
    %1032 = vmatprep.subr.mxu0 0.0
    %1033 = vmatpush1.xpose.msra.mxu0 0.0
    %1034 = vmatprep.subr.mxu0 0.0
    %1035 = vmatpush1.xpose.msra.mxu0 0.0
    %1036 = vmatprep.subr.mxu0 0.0
    %1037 = vmatpush1.xpose.msra.mxu0 0.0
    %1038 = vmatprep.subr.mxu0 0.0
    %1039 = vmatpush1.xpose.msra.mxu0 0.0
    %1040 = vmatprep.subr.mxu0 0.0
    %1041 = vmatpush1.xpose.msra.mxu0 0.0
    %1042 = vmatprep.subr.mxu0 0.0
    %1043 = vmatpush1.xpose.msra.mxu0 0.0
    %1044 = vmatprep.subr.mxu0 0.0
    %1045 = vmatpush1.xpose.msra.mxu0 0.0
    %1046 = vmatprep.subr.mxu0 0.0
    %1047 = vmatpush1.xpose.msra.mxu0 0.0
    %1048 = vmatprep.subr.mxu0 0.0
    %1049 = vmatpush1.xpose.msra.mxu0 0.0
    %1050 = vmatprep.subr.mxu0 0.0
    %1051 = vmatpush1.xpose.msra.mxu0 0.0
    %1052 = vmatprep.subr.mxu0 0.0
    %1053 = vmatpush1.xpose.msra.mxu0 0.0
    %1054 = vmatprep.subr.mxu0 0.0
    %1055 = vmatpush1.xpose.msra.mxu0 0.0
    %1056 = vmatprep.subr.mxu0 0.0
    %1057 = vmatpush1.xpose.msra.mxu0 0.0
    %1058 = vmatprep.subr.mxu0 0.0
    %1059 = vmatpush1.xpose.msra.mxu0 0.0
    %1060 = vmatprep.subr.mxu0 0.0
    %1061 = vmatpush1.xpose.msra.mxu0 0.0
    %1062 = vmatprep.subr.mxu0 0.0
    %1063 = vmatpush1.xpose.msra.mxu0 0.0
    %1064 = vmatprep.subr.mxu0 0.0
    %1065 = vmatpush1.xpose.msra.mxu0 0.0
    %1066 = vmatprep.subr.mxu0 0.0
    %1067 = vmatpush1.xpose.msra.mxu0 0.0
    %1068 = vmatprep.subr.mxu0 0.0
    %1069 = vmatpush1.xpose.msra.mxu0 0.0
    %1070 = vmatprep.subr.mxu0 0.0
    %1071 = vmatpush1.xpose.msra.mxu0 0.0
    %1072 = vmatprep.subr.mxu0 0.0
    %1073 = vmatpush1.xpose.msra.mxu0 0.0
    %1074 = vmatprep.subr.mxu0 0.0
    %1075 = vmatpush1.xpose.msra.mxu0 0.0
    %1076 = vmatprep.subr.mxu0 0.0
    %1077 = vmatpush1.xpose.msra.mxu0 0.0
    %1078 = vmatprep.mubr.f32.mxu0 %v939
    %1079 = vmatmul.mubr.f32.gmra.mrb[0].mxu0 %v937
    %v1080 = vpop.f32.mrb[0].mxu0
    %v1081 = vadd.f32 %v1011, %v1080
    %v1082 = vpop.f32.mrb[0].mxu0
    %1083 = vdwg.mxu0
    %s1084 = scalar_lea.vmem %s6, 6
    %1085 = vst.msk [vmem:[%s1084] sm:$0x3] %vm360, %v1081
    %s1086 = scalar_lea.vmem %s3, 24
    %v1087 = vld [vmem:[%s1086] sm:$0xff]
    %v1089 = vsel %vm531, %v1081, 0
    %1091 = vmatprep.subr.mxu0 0.0
    %1092 = vmatpush1.msra.mxu0 %v1087
    %1093 = vmatprep.subr.mxu0 0.0
    %1094 = vmatpush1.msra.mxu0 0.0
    %1095 = vmatprep.subr.mxu0 0.0
    %1096 = vmatpush1.msra.mxu0 0.0
    %1097 = vmatprep.subr.mxu0 0.0
    %1098 = vmatpush1.msra.mxu0 0.0
    %1099 = vmatprep.subr.mxu0 0.0
    %1100 = vmatpush1.msra.mxu0 0.0
    %1101 = vmatprep.subr.mxu0 0.0
    %1102 = vmatpush1.msra.mxu0 0.0
    %1103 = vmatprep.subr.mxu0 0.0
    %1104 = vmatpush1.msra.mxu0 0.0
    %1105 = vmatprep.subr.mxu0 0.0
    %1106 = vmatpush1.msra.mxu0 0.0
    %1107 = vmatprep.subr.mxu0 0.0
    %1108 = vmatpush1.msra.mxu0 0.0
    %1109 = vmatprep.subr.mxu0 0.0
    %1110 = vmatpush1.msra.mxu0 0.0
    %1111 = vmatprep.subr.mxu0 0.0
    %1112 = vmatpush1.msra.mxu0 0.0
    %1113 = vmatprep.subr.mxu0 0.0
    %1114 = vmatpush1.msra.mxu0 0.0
    %1115 = vmatprep.subr.mxu0 0.0
    %1116 = vmatpush1.msra.mxu0 0.0
    %1117 = vmatprep.subr.mxu0 0.0
    %1118 = vmatpush1.msra.mxu0 0.0
    %1119 = vmatprep.subr.mxu0 0.0
    %1120 = vmatpush1.msra.mxu0 0.0
    %1121 = vmatprep.subr.mxu0 0.0
    %1122 = vmatpush1.msra.mxu0 0.0
    %1123 = vmatprep.subr.mxu0 0.0
    %1124 = vmatpush1.msra.mxu0 0.0
    %1125 = vmatprep.subr.mxu0 0.0
    %1126 = vmatpush1.msra.mxu0 0.0
    %1127 = vmatprep.subr.mxu0 0.0
    %1128 = vmatpush1.msra.mxu0 0.0
    %1129 = vmatprep.subr.mxu0 0.0
    %1130 = vmatpush1.msra.mxu0 0.0
    %1131 = vmatprep.subr.mxu0 0.0
    %1132 = vmatpush1.msra.mxu0 0.0
    %1133 = vmatprep.subr.mxu0 0.0
    %1134 = vmatpush1.msra.mxu0 0.0
    %1135 = vmatprep.subr.mxu0 0.0
    %1136 = vmatpush1.msra.mxu0 0.0
    %1137 = vmatprep.subr.mxu0 0.0
    %1138 = vmatpush1.msra.mxu0 0.0
    %1139 = vmatprep.subr.mxu0 0.0
    %1140 = vmatpush1.msra.mxu0 0.0
    %1141 = vmatprep.subr.mxu0 0.0
    %1142 = vmatpush1.msra.mxu0 0.0
    %1143 = vmatprep.subr.mxu0 0.0
    %1144 = vmatpush1.msra.mxu0 0.0
    %1145 = vmatprep.subr.mxu0 0.0
    %1146 = vmatpush1.msra.mxu0 0.0
    %1147 = vmatprep.subr.mxu0 0.0
    %1148 = vmatpush1.msra.mxu0 0.0
    %1149 = vmatprep.subr.mxu0 0.0
    %1150 = vmatpush1.msra.mxu0 0.0
    %1151 = vmatprep.subr.mxu0 0.0
    %1152 = vmatpush1.msra.mxu0 0.0
    %1153 = vmatprep.subr.mxu0 0.0
    %1154 = vmatpush1.msra.mxu0 0.0
    %1155 = vmatprep.mubr.f32.mxu0 0.0
    %1156 = vmatmul.mubr.f32.gmra.mrb[0].mxu0 %v1089
    %v1157 = vpop.f32.mrb[0].mxu0
    %v1158 = vadd.f32 0.0, %v1157
    %v1159 = vpop.f32.mrb[0].mxu0
    %1160 = vdwg.mxu0
    %v1161 = vadd.f32 %v919, %v1158
    %v1162 = vld [vmem:[%s4] sm:$0x1]
    %v1163 = vlaneseq
    %v1164 = vshrl.u32 %v1163, 7
    %v1165 = vsub.s32 0, %v1164
    %v1166 = vrot.slane %v1162, %v1165
    %v1167 = vadd.f32 %v1161, %v1166
    %vm1168 = vcmask 517120
    %v1169 = vsel %vm1168, %v1167, 0.0
    %v1170 = vrot.slane %v1169, 4
    %v1171 = vadd.f32 %v1169, %v1170
    %v1172 = vrot.slane %v1171, 2
    %v1173 = vadd.f32 %v1171, %v1172
    %v1174 = vrot.slane %v1173, 1
    %v1175 = vadd.f32 %v1173, %v1174
    %v1176 = vrcp.pop 2.0
    %v1177 = vmul.f32 %v1175, %v1176
    %v1178 = vsub.f32 %v1167, %v1177
    %v1179 = vmul.f32 %v1178, %v1178
    %v1180 = vsel %vm1168, %v1179, 0.0
    %v1181 = vrot.slane %v1180, 4
    %v1182 = vadd.f32 %v1180, %v1181
    %v1183 = vrot.slane %v1182, 2
    %v1184 = vadd.f32 %v1182, %v1183
    %v1185 = vrot.slane %v1184, 1
    %v1186 = vadd.f32 %v1184, %v1185
    %v1187 = vmul.f32 %v1186, %v1176
    %v1188 = vadd.f32 %v1187, 1e-05
    %v1189 = vrsqrt.pop %v1188
    %v1190 = vmul.f32 %v1178, %v1189
    %v1191 = vld [vmem:[%s4 + $0x1] sm:$0x1]
    %v1192 = vlaneseq
    %v1193 = vshrl.u32 %v1192, 7
    %v1194 = vsub.s32 0, %v1193
    %v1195 = vrot.slane %v1191, %v1194
    %v1196 = vmul.f32 %v1190, %v1195
    %v1197 = vld [vmem:[%s4 + $0x2] sm:$0x1]
    %v1198 = vlaneseq
    %v1199 = vshrl.u32 %v1198, 7
    %v1200 = vsub.s32 0, %v1199
    %v1201 = vrot.slane %v1197, %v1200
    %v1202 = vadd.f32 %v1196, %v1201
    %v1203 = vmax.f32 %v1202, 0.0
    %v1204 = vld [vmem:[%s5] sm:$0xff]
    %v1205 = vld [vmem:[%s5 + $0x8] sm:$0xff]
    %v1206 = vld [vmem:[%s5 + $0x10] sm:$0xff]
    %v1207 = vld [vmem:[%s5 + $0x18] sm:$0xff]
    %v1208 = vld [vmem:[%s5 + $0x20] sm:$0xff]
    %v1209 = vld [vmem:[%s5 + $0x28] sm:$0xff]
    %v1210 = vld [vmem:[%s5 + $0x30] sm:$0xff]
    %v1211 = vld [vmem:[%s5 + $0x38] sm:$0xff]
    %v1212 = vld [vmem:[%s4 + $0x3] sm:$0x1]
    %v1213 = vlaneseq
    %v1214 = vshrl.u32 %v1213, 7
    %v1215 = vsub.s32 0, %v1214
    %v1216 = vrot.slane %v1212, %v1215
    %vm1217 = vcmask 523264
    %v1219 = vsel %vm1217, %v1203, 0
    %1221 = vmatprep.subr.mxu0 0.0
    %1222 = vmatpush1.msra.mxu0 %v1204
    %1223 = vmatprep.subr.mxu0 0.0
    %1224 = vmatpush1.msra.mxu0 %v1205
    %1225 = vmatprep.subr.mxu0 0.0
    %1226 = vmatpush1.msra.mxu0 %v1206
    %1227 = vmatprep.subr.mxu0 0.0
    %1228 = vmatpush1.msra.mxu0 %v1207
    %1229 = vmatprep.subr.mxu0 0.0
    %1230 = vmatpush1.msra.mxu0 %v1208
    %1231 = vmatprep.subr.mxu0 0.0
    %1232 = vmatpush1.msra.mxu0 %v1209
    %1233 = vmatprep.subr.mxu0 0.0
    %1234 = vmatpush1.msra.mxu0 %v1210
    %1235 = vmatprep.subr.mxu0 0.0
    %1236 = vmatpush1.msra.mxu0 %v1211
    %1237 = vmatprep.subr.mxu0 0.0
    %1238 = vmatpush1.msra.mxu0 0.0
    %1239 = vmatprep.subr.mxu0 0.0
    %1240 = vmatpush1.msra.mxu0 0.0
    %1241 = vmatprep.subr.mxu0 0.0
    %1242 = vmatpush1.msra.mxu0 0.0
    %1243 = vmatprep.subr.mxu0 0.0
    %1244 = vmatpush1.msra.mxu0 0.0
    %1245 = vmatprep.subr.mxu0 0.0
    %1246 = vmatpush1.msra.mxu0 0.0
    %1247 = vmatprep.subr.mxu0 0.0
    %1248 = vmatpush1.msra.mxu0 0.0
    %1249 = vmatprep.subr.mxu0 0.0
    %1250 = vmatpush1.msra.mxu0 0.0
    %1251 = vmatprep.subr.mxu0 0.0
    %1252 = vmatpush1.msra.mxu0 0.0
    %1253 = vmatprep.subr.mxu0 0.0
    %1254 = vmatpush1.msra.mxu0 0.0
    %1255 = vmatprep.subr.mxu0 0.0
    %1256 = vmatpush1.msra.mxu0 0.0
    %1257 = vmatprep.subr.mxu0 0.0
    %1258 = vmatpush1.msra.mxu0 0.0
    %1259 = vmatprep.subr.mxu0 0.0
    %1260 = vmatpush1.msra.mxu0 0.0
    %1261 = vmatprep.subr.mxu0 0.0
    %1262 = vmatpush1.msra.mxu0 0.0
    %1263 = vmatprep.subr.mxu0 0.0
    %1264 = vmatpush1.msra.mxu0 0.0
    %1265 = vmatprep.subr.mxu0 0.0
    %1266 = vmatpush1.msra.mxu0 0.0
    %1267 = vmatprep.subr.mxu0 0.0
    %1268 = vmatpush1.msra.mxu0 0.0
    %1269 = vmatprep.subr.mxu0 0.0
    %1270 = vmatpush1.msra.mxu0 0.0
    %1271 = vmatprep.subr.mxu0 0.0
    %1272 = vmatpush1.msra.mxu0 0.0
    %1273 = vmatprep.subr.mxu0 0.0
    %1274 = vmatpush1.msra.mxu0 0.0
    %1275 = vmatprep.subr.mxu0 0.0
    %1276 = vmatpush1.msra.mxu0 0.0
    %1277 = vmatprep.subr.mxu0 0.0
    %1278 = vmatpush1.msra.mxu0 0.0
    %1279 = vmatprep.subr.mxu0 0.0
    %1280 = vmatpush1.msra.mxu0 0.0
    %1281 = vmatprep.subr.mxu0 0.0
    %1282 = vmatpush1.msra.mxu0 0.0
    %1283 = vmatprep.subr.mxu0 0.0
    %1284 = vmatpush1.msra.mxu0 0.0
    %1285 = vmatprep.mubr.f32.mxu0 0.0
    %1286 = vmatmul.mubr.f32.gmra.mrb[0].mxu0 %v1219
    %v1287 = vpop.f32.mrb[0].mxu0
    %v1288 = vadd.f32 %v1216, %v1287
    %v1289 = vpop.f32.mrb[0].mxu0
    %1290 = vdwg.mxu0
    %vm1291 = vcmask 123904
    %1292 = vst.msk [vmem:[#allocation2] sm:$0x3] %vm1291, %v1288
    // Predicated region
    $region26: #{net_wrapper_forward.1} parent=1 // pred_check
      _
    $region27: #{net_wrapper_forward.1} parent=1 // pred_check_branch
      %1294 = sbr.rel (0) target = $region29
    $region28: #{net_wrapper_forward.1} parent=1 // pred_region
      _
    $region29: #{net_wrapper_forward.1} parent=1 // pred_fallthru
      _
    // Predicated region
    $region30: #{net_wrapper_forward.1} parent=1 // pred_check
      _
    $region31: #{net_wrapper_forward.1} parent=1 // pred_check_branch
      %1296 = sbr.rel (0) target = $region33
    $region32: #{net_wrapper_forward.1} parent=1 // pred_region
      %s1298 = ssub.s32 32, 32
      %1299 = vsyncadd [#allocation3], %s1298
      %s1301 = sshll.u32 [#allocation2], 4
      %s1302 = int_to_ptr.vmem [resolvable:$true] %s1301
      %1304 = dma.vmem_to_hbm [thread:$0]  %s1302, 32, %s7, [#allocation3]
    $region33: #{net_wrapper_forward.1} parent=1 // pred_fallthru
      _
    // Predicated region
    $region34: #{net_wrapper_forward.1} parent=1 // pred_check
      _
    $region35: #{net_wrapper_forward.1} parent=1 // pred_check_branch
      %1306 = sbr.rel (0) target = $region37
    $region36: #{net_wrapper_forward.1} parent=1 // pred_region
      _
    $region37: #{net_wrapper_forward.1} parent=1 // pred_fallthru
      _
    // Predicated region
    $region38: #{net_wrapper_forward.1} parent=1 // pred_check
      _
    $region39: #{net_wrapper_forward.1} parent=1 // pred_check_branch
      %1308 = sbr.rel (0) target = $region41
    $region40: #{net_wrapper_forward.1} parent=1 // pred_region
      %1309 = dma.done [#allocation3], 32
    $region41: #{net_wrapper_forward.1} parent=1 // pred_fallthru
      _
    %1310 = vsyncpa [#allocation3], 1

</llo_original>
